<compile_context>
chip_gen: v5e
topology: v5e:2x2
jax: 0.10.0
libtpu: 0.0.40
codegen_flags: <defaults>
</compile_context>

<pallas_src>
import functools
import math

import jax
import jax.numpy as jnp
from jax.experimental import pallas as pl
from jax.experimental.pallas import tpu as pltpu

_LN_EPS = 1e-5  # PyTorch nn.LayerNorm default

_WEIGHT_ORDER = ("w_in", "b_in", "ln_g", "ln_b", "w2", "b2", "w3p", "b3p",
                 "wf2", "bf2", "wc1", "bc1", "wc2_row", "bc2")


# --------------------------------------------------------------------------- #
# tiling / VMEM helpers
# --------------------------------------------------------------------------- #
def _pick_batch_tile(b, s, target_rows=1024):
    """Each grid step processes tb whole softmax groups (tb*s rows).

    Constraints: conf output block is (tb, s), so tb must be a multiple of 8 or equal b.
    Prefers >= 2 grid steps (v7x megacore) and a tb that divides b (no padded tail step).
    """
    max_tb = max(1, target_rows // max(s, 1))
    if b <= 8:
        return b
    if b < 16 and max_tb >= b:
        return b
    tb = min(max_tb, max(8, b // 2))
    tb = max(8, (tb // 8) * 8)
    for cand in range(tb, 7, -8):
        if b % cand == 0:
            return cand
    return tb


def _estimate_vmem_bytes(weights, tb, s, d, out_pad, two_r, itemsize):
    rows = tb * s
    w_bytes = sum(int(w.size) * w.dtype.itemsize for w in weights)
    wide = two_r + 2 * d
    tiles = rows * (d + out_pad + 1) * itemsize * 2          # x / pred / conf (double-buffered)
    inter = rows * (wide + max(out_pad, wide) + 512) * 4     # f32 in-register intermediates
    return 2 * w_bytes + tiles + inter


def _vmem_limit_bytes(estimate):
    phys = 64 * 1024 * 1024  # conservative default (v7x per-core); v5e/v6e have 128 MiB
    try:
        phys = int(getattr(pltpu.get_tpu_info(), "vmem_capacity_bytes", phys))
    except Exception:
        pass
    cap = int(phys * 0.85)
    return int(min(max(int(estimate) + 8 * 1024 * 1024, 32 * 1024 * 1024), cap))


def _weight_spec(shape, pipeline_mode):
    nd = len(shape)
    idx = lambda i, _nd=nd: (0,) * _nd  # constant block index -> VMEM-resident, no re-DMA
    if pipeline_mode is None:
        return pl.BlockSpec(shape, idx)
    return pl.BlockSpec(shape, idx, pipeline_mode=pipeline_mode)


# --------------------------------------------------------------------------- #
# Fused kernel: regression head + classification head + softmax, one pass over x
# --------------------------------------------------------------------------- #
def _fused_heads_kernel(
    two_r,
    x_ref,
    w_in_ref, b_in_ref,        # concat [w1 | wf1] (bf16), [b1 | bf1] (f32)
    g_ref, beta_ref,           # LayerNorm(2r) gamma/beta (f32)
    w2_ref, b2_ref,            # reg Linear(2r -> r)
    w3_ref, b3_ref,            # reg Linear(r -> out), zero-padded to 128 lanes
    wf2_ref, bf2_ref,          # cls FFN Linear(2d -> d)
    wc1_ref, bc1_ref,          # cls Linear(d -> c)
    wc2_ref, bc2_ref,          # cls Linear(c -> 1) as a (1, c) row + (1, 1) bias
    pred_ref, conf_ref,
):
    tb, s, d = x_ref.shape
    x = x_ref[...].reshape(tb * s, d).astype(jnp.bfloat16)

    # ---- shared first matmul feeding both heads (bf16 MXU, f32 accumulation) ----
    hf = jnp.dot(x, w_in_ref[...], preferred_element_type=jnp.float32) + b_in_ref[...]
    h = hf[:, :two_r]      # regression branch (pre-LayerNorm)
    f = hf[:, two_r:]      # classification FFN branch (pre-ReLU)

    # ---- regression head: LayerNorm -> ReLU -> Linear -> Linear (LN math in f32) ----
    mu = jnp.mean(h, axis=-1, keepdims=True)
    var = jnp.mean(jnp.square(h - mu), axis=-1, keepdims=True)
    h = (h - mu) * jax.lax.rsqrt(var + _LN_EPS) * g_ref[...] + beta_ref[...]
    h = jnp.maximum(h, 0.0).astype(jnp.bfloat16)
    h = jnp.dot(h, w2_ref[...], preferred_element_type=jnp.float32) + b2_ref[...]
    pred = jnp.dot(h.astype(jnp.bfloat16), w3_ref[...],
                   preferred_element_type=jnp.float32) + b3_ref[...]
    pred_ref[...] = pred.reshape(tb, s, -1).astype(pred_ref.dtype)   # lane-dense 128-wide store

    # ---- classification head: ReLU -> Linear(2d->d) -> Linear(d->c) -> row-dot -> softmax ----
    # TODO(synk): eval-mode dropout inside cls_FFN == identity here.
    f = jnp.maximum(f, 0.0).astype(jnp.bfloat16)
    f = jnp.dot(f, wf2_ref[...], preferred_element_type=jnp.float32) + bf2_ref[...]
    c = jnp.dot(f.astype(jnp.bfloat16), wc1_ref[...],
                preferred_element_type=jnp.float32) + bc1_ref[...]
    # Linear(c -> 1): VPU/XLU reduction instead of a 1-live-lane MXU matmul.
    cw = c * wc2_ref[...]                                    # (tb*s, c) * (1, c)
    logit = jnp.sum(cw.reshape(tb, s, -1), axis=-1) + bc2_ref[...]   # (tb, s)

    # fused numerically-stable softmax over the S candidates of each batch row
    logit = logit - jnp.max(logit, axis=-1, keepdims=True)
    e = jnp.exp(logit)
    conf_ref[...] = (e / jnp.sum(e, axis=-1, keepdims=True)).astype(conf_ref.dtype)


# --------------------------------------------------------------------------- #
# Wrapper
# --------------------------------------------------------------------------- #
def prepare_params(params):
    """One-time weight prep: bf16 matrices, concatenated first layer, padded w3, row-form wc2."""
    p = params
    d_model, two_r = p["w1"].shape
    reg_h = p["w3"].shape[0]
    out_size = p["w3"].shape[1]
    out_pad = ((out_size + 127) // 128) * 128
    w3p = jnp.zeros((reg_h, out_pad), jnp.bfloat16).at[:, :out_size].set(
        p["w3"].astype(jnp.bfloat16))
    b3p = jnp.zeros((1, out_pad), jnp.float32).at[:, :out_size].set(
        p["b3"].astype(jnp.float32))
    return dict(
        w_in=jnp.concatenate([p["w1"], p["wf1"]], axis=1).astype(jnp.bfloat16),
        b_in=jnp.concatenate([p["b1"], p["bf1"]], axis=1).astype(jnp.float32),
        ln_g=p["ln_g"].astype(jnp.float32),
        ln_b=p["ln_b"].astype(jnp.float32),
        w2=p["w2"].astype(jnp.bfloat16), b2=p["b2"].astype(jnp.float32),
        w3p=w3p, b3p=b3p,
        wf2=p["wf2"].astype(jnp.bfloat16), bf2=p["bf2"].astype(jnp.float32),
        wc1=p["wc1"].astype(jnp.bfloat16), bc1=p["bc1"].astype(jnp.float32),
        wc2_row=p["wc2"].reshape(1, -1).astype(jnp.float32),
        bc2=p["bc2"].reshape(1, 1).astype(jnp.float32),
        two_r=int(two_r), out_size=int(out_size), out_pad=int(out_pad),
        d_model=int(d_model),
    )


def generator_forward(prepared, x, *, target_rows=1024):
    """x: (B, S, d_model) -> (pred (B, S, out_size), conf (B, S))."""
    b, s, d = x.shape
    assert d == prepared["d_model"]
    two_r = prepared["two_r"]
    out_size = prepared["out_size"]
    out_pad = prepared["out_pad"]
    weights = [prepared[k] for k in _WEIGHT_ORDER]

    tb = _pick_batch_tile(b, s, target_rows)
    est = _estimate_vmem_bytes(weights, tb, s, d, out_pad, two_r, x.dtype.itemsize)
    vlim = _vmem_limit_bytes(est)
    kern = functools.partial(_fused_heads_kernel, two_r)

    def build(pipeline_mode):
        wspecs = [_weight_spec(w.shape, pipeline_mode) for w in weights]
        return pl.pallas_call(
            kern,
            out_shape=(jax.ShapeDtypeStruct((b, s, out_pad), x.dtype),
                       jax.ShapeDtypeStruct((b, s), x.dtype)),
            grid=(pl.cdiv(b, tb),),
            in_specs=[pl.BlockSpec((tb, s, d), lambda i: (i, 0, 0))] + wspecs,
            out_specs=(pl.BlockSpec((tb, s, out_pad), lambda i: (i, 0, 0)),
                       pl.BlockSpec((tb, s), lambda i: (i, 0))),
            compiler_params=pltpu.CompilerParams(
                dimension_semantics=("parallel",),
                vmem_limit_bytes=vlim),
        )

    try:
        mode = pl.Buffered(1) if hasattr(pl, "Buffered") else None
        pred_p, conf = build(mode)(x, *weights)
    except Exception:
        # Fallback: default (double-buffered) weight blocks if Buffered(1) is unsupported.
        pred_p, conf = build(None)(x, *weights)

    return pred_p[..., :out_size], conf


# --------------------------------------------------------------------------- #
# Parameter init (weights stored as (in, out) == transpose of torch layout)
# --------------------------------------------------------------------------- #
def _linear_init(key, fan_in, fan_out):
    kw, kb = jax.random.split(key)
    bound = 1.0 / math.sqrt(fan_in)
    w = jax.random.uniform(kw, (fan_in, fan_out), jnp.float32, -bound, bound)
    b = jax.random.uniform(kb, (1, fan_out), jnp.float32, -bound, bound)
    return w, b


def init_params(key, d_model, out_size, reg_h_dim=128, cls_h_dim=128):
    ks = jax.random.split(key, 7)
    w1, b1 = _linear_init(ks[0], d_model, 2 * reg_h_dim)
    w2, b2 = _linear_init(ks[1], 2 * reg_h_dim, reg_h_dim)
    w3, b3 = _linear_init(ks[2], reg_h_dim, out_size)
    wf1, bf1 = _linear_init(ks[3], d_model, 2 * d_model)
    wf2, bf2 = _linear_init(ks[4], 2 * d_model, d_model)
    wc1, bc1 = _linear_init(ks[5], d_model, cls_h_dim)
    wc2, bc2 = _linear_init(ks[6], cls_h_dim, 1)
    return dict(
        w1=w1, b1=b1,
        ln_g=jnp.ones((1, 2 * reg_h_dim), jnp.float32),
        ln_b=jnp.zeros((1, 2 * reg_h_dim), jnp.float32),
        w2=w2, b2=b2, w3=w3, b3=b3,
        wf1=wf1, bf1=bf1, wf2=wf2, bf2=bf2,
        wc1=wc1, bc1=bc1, wc2=wc2, bc2=bc2,
    )


# --------------------------------------------------------------------------- #
# Pure-JAX reference (eval-mode math, f32 HIGHEST precision) for correctness check
# --------------------------------------------------------------------------- #
def generator_forward_ref(params, x):
    p = params
    mm = functools.partial(jnp.matmul, precision=jax.lax.Precision.HIGHEST)

    h = mm(x, p["w1"]) + p["b1"]
    mu = jnp.mean(h, axis=-1, keepdims=True)
    var = jnp.mean(jnp.square(h - mu), axis=-1, keepdims=True)
    h = (h - mu) * jax.lax.rsqrt(var + _LN_EPS) * p["ln_g"] + p["ln_b"]
    h = jnp.maximum(h, 0.0)
    h = mm(h, p["w2"]) + p["b2"]
    pred = mm(h, p["w3"]) + p["b3"]

    f = jnp.maximum(mm(x, p["wf1"]) + p["bf1"], 0.0)
    f = mm(f, p["wf2"]) + p["bf2"]
    c = mm(f, p["wc1"]) + p["bc1"]
    logits = (mm(c, p["wc2"]) + p["bc2"])[..., 0]
    conf = jax.nn.softmax(logits, axis=-1)
    return pred, conf


# --------------------------------------------------------------------------- #
if __name__ == "__main__":
    B, S = 2, 8          # batch, number of candidates (softmax runs over S)
    D_MODEL = 128        # lane-dense hidden size
    OUT_SIZE = 12
    # dropout=0.1 in the torch ctor; eval-mode forward => identity (see TODO above)

    key = jax.random.PRNGKey(0)
    kx, kp = jax.random.split(key)
    x = jax.random.normal(kx, (B, S, D_MODEL), dtype=jnp.float32)
    params = init_params(kp, D_MODEL, OUT_SIZE)
    prepared = prepare_params(params)

    pred, conf = generator_forward(prepared, x)
    jax.block_until_ready((pred, conf))

    pred_ref, conf_ref = generator_forward_ref(params, x)
    assert pred.shape == (B, S, OUT_SIZE) and conf.shape == (B, S)
    # bf16 MXU operands vs. f32 HIGHEST reference -> bf16-appropriate tolerance.
    assert jnp.allclose(pred, pred_ref, atol=2.5e-2, rtol=2.5e-2), "pred mismatch vs reference"
    assert jnp.allclose(conf, conf_ref, atol=2.5e-2, rtol=2.5e-2), "conf mismatch vs reference"
    assert jnp.allclose(jnp.sum(conf, axis=-1), 1.0, atol=1e-4), "softmax rows must sum to 1"

    print("KERNEL_OK")
</pallas_src>

<mosaic_0001>
module attributes {stable_mosaic.version = 11 : i64} {
  func.func @_fused_heads_kernel(%arg0: i32, %arg1: memref<2x8x128xf32, #tpu.memory_space<vmem>>, %arg2: memref<128x512xbf16, #tpu.memory_space<vmem>>, %arg3: memref<1x512xf32, #tpu.memory_space<vmem>>, %arg4: memref<1x256xf32, #tpu.memory_space<vmem>>, %arg5: memref<1x256xf32, #tpu.memory_space<vmem>>, %arg6: memref<256x128xbf16, #tpu.memory_space<vmem>>, %arg7: memref<1x128xf32, #tpu.memory_space<vmem>>, %arg8: memref<128x128xbf16, #tpu.memory_space<vmem>>, %arg9: memref<1x128xf32, #tpu.memory_space<vmem>>, %arg10: memref<256x128xbf16, #tpu.memory_space<vmem>>, %arg11: memref<1x128xf32, #tpu.memory_space<vmem>>, %arg12: memref<128x128xbf16, #tpu.memory_space<vmem>>, %arg13: memref<1x128xf32, #tpu.memory_space<vmem>>, %arg14: memref<1x128xf32, #tpu.memory_space<vmem>>, %arg15: memref<1x1xf32, #tpu.memory_space<vmem>>, %arg16: memref<2x8x128xf32, #tpu.memory_space<vmem>>, %arg17: memref<2x8xf32, #tpu.memory_space<vmem>>) attributes {dimension_semantics = [#tpu.dimension_semantics<parallel>], iteration_bounds = array<i64: 1>, scalar_prefetch = 0 : i64, scratch_operands = 0 : i64, tpu.core_type = #tpu.core_type<tc>, window_params = [{transform_indices = @transform_0, window_bounds = array<i64: 2, 8, 128>}, {pipeline_mode = #tpu.pipeline_mode<synchronous>, transform_indices = @transform_1, window_bounds = array<i64: 128, 512>}, {pipeline_mode = #tpu.pipeline_mode<synchronous>, transform_indices = @transform_2, window_bounds = array<i64: 1, 512>}, {pipeline_mode = #tpu.pipeline_mode<synchronous>, transform_indices = @transform_3, window_bounds = array<i64: 1, 256>}, {pipeline_mode = #tpu.pipeline_mode<synchronous>, transform_indices = @transform_4, window_bounds = array<i64: 1, 256>}, {pipeline_mode = #tpu.pipeline_mode<synchronous>, transform_indices = @transform_5, window_bounds = array<i64: 256, 128>}, {pipeline_mode = #tpu.pipeline_mode<synchronous>, transform_indices = @transform_6, window_bounds = array<i64: 1, 128>}, {pipeline_mode = #tpu.pipeline_mode<synchronous>, transform_indices = @transform_7, window_bounds = array<i64: 128, 128>}, {pipeline_mode = #tpu.pipeline_mode<synchronous>, transform_indices = @transform_8, window_bounds = array<i64: 1, 128>}, {pipeline_mode = #tpu.pipeline_mode<synchronous>, transform_indices = @transform_9, window_bounds = array<i64: 256, 128>}, {pipeline_mode = #tpu.pipeline_mode<synchronous>, transform_indices = @transform_10, window_bounds = array<i64: 1, 128>}, {pipeline_mode = #tpu.pipeline_mode<synchronous>, transform_indices = @transform_11, window_bounds = array<i64: 128, 128>}, {pipeline_mode = #tpu.pipeline_mode<synchronous>, transform_indices = @transform_12, window_bounds = array<i64: 1, 128>}, {pipeline_mode = #tpu.pipeline_mode<synchronous>, transform_indices = @transform_13, window_bounds = array<i64: 1, 128>}, {pipeline_mode = #tpu.pipeline_mode<synchronous>, transform_indices = @transform_14, window_bounds = array<i64: 1, 1>}, {transform_indices = @transform_15, window_bounds = array<i64: 2, 8, 128>}, {transform_indices = @transform_16, window_bounds = array<i64: 2, 8>}]} {
    %c0 = arith.constant 0 : index
    %c0_0 = arith.constant 0 : index
    %c0_1 = arith.constant 0 : index
    %0 = vector.load %arg1[%c0, %c0_0, %c0_1] : memref<2x8x128xf32, #tpu.memory_space<vmem>>, vector<2x8x128xf32>
    %1 = vector.shape_cast %0 : vector<2x8x128xf32> to vector<16x128xf32>
    %2 = arith.truncf %1 : vector<16x128xf32> to vector<16x128xbf16>
    %c0_2 = arith.constant 0 : index
    %c0_3 = arith.constant 0 : index
    %3 = vector.load %arg2[%c0_2, %c0_3] : memref<128x512xbf16, #tpu.memory_space<vmem>>, vector<128x512xbf16>
    %cst = arith.constant dense<0.000000e+00> : vector<16x512xf32>
    %4 = tpu.matmul %2, %3, %cst {dimension_numbers = #tpu.dot_dimension_numbers<[1], [0], [0], [1], [0, 0, 1, 1], [], []>} : vector<16x128xbf16>, vector<128x512xbf16>, vector<16x512xf32> -> vector<16x512xf32>
    %c0_4 = arith.constant 0 : index
    %c0_5 = arith.constant 0 : index
    %5 = vector.load %arg3[%c0_4, %c0_5] : memref<1x512xf32, #tpu.memory_space<vmem>>, vector<1x512xf32>
    %6 = vector.broadcast %5 : vector<1x512xf32> to vector<16x512xf32>
    %7 = arith.addf %4, %6 : vector<16x512xf32>
    %8 = vector.extract_strided_slice %7 {offsets = [0, 0], sizes = [16, 256], strides = [1, 1]} : vector<16x512xf32> to vector<16x256xf32>
    %9 = vector.extract_strided_slice %7 {offsets = [0, 256], sizes = [16, 256], strides = [1, 1]} : vector<16x512xf32> to vector<16x256xf32>
    %cst_6 = arith.constant dense<0.000000e+00> : vector<16xf32>
    %10 = vector.multi_reduction <add>, %8, %cst_6 [1] : vector<16x256xf32> to vector<16xf32>
    %11 = vector.shape_cast %10 : vector<16xf32> to vector<16x1xf32>
    %cst_7 = arith.constant 2.560000e+02 : f32
    %12 = vector.broadcast %cst_7 : f32 to vector<16x1xf32>
    %13 = arith.divf %11, %12 : vector<16x1xf32>
    %14 = vector.broadcast %13 : vector<16x1xf32> to vector<16x256xf32>
    %15 = arith.subf %8, %14 : vector<16x256xf32>
    %16 = arith.mulf %15, %15 : vector<16x256xf32>
    %cst_8 = arith.constant dense<0.000000e+00> : vector<16xf32>
    %17 = vector.multi_reduction <add>, %16, %cst_8 [1] : vector<16x256xf32> to vector<16xf32>
    %18 = vector.shape_cast %17 : vector<16xf32> to vector<16x1xf32>
    %cst_9 = arith.constant 2.560000e+02 : f32
    %19 = vector.broadcast %cst_9 : f32 to vector<16x1xf32>
    %20 = arith.divf %18, %19 : vector<16x1xf32>
    %21 = vector.broadcast %13 : vector<16x1xf32> to vector<16x256xf32>
    %22 = arith.subf %8, %21 : vector<16x256xf32>
    %cst_10 = arith.constant 9.99999974E-6 : f32
    %23 = vector.broadcast %cst_10 : f32 to vector<16x1xf32>
    %24 = arith.addf %20, %23 : vector<16x1xf32>
    %25 = math.rsqrt %24 : vector<16x1xf32>
    %26 = vector.broadcast %25 : vector<16x1xf32> to vector<16x256xf32>
    %27 = arith.mulf %22, %26 : vector<16x256xf32>
    %c0_11 = arith.constant 0 : index
    %c0_12 = arith.constant 0 : index
    %28 = vector.load %arg4[%c0_11, %c0_12] : memref<1x256xf32, #tpu.memory_space<vmem>>, vector<1x256xf32>
    %29 = vector.broadcast %28 : vector<1x256xf32> to vector<16x256xf32>
    %30 = arith.mulf %27, %29 : vector<16x256xf32>
    %c0_13 = arith.constant 0 : index
    %c0_14 = arith.constant 0 : index
    %31 = vector.load %arg5[%c0_13, %c0_14] : memref<1x256xf32, #tpu.memory_space<vmem>>, vector<1x256xf32>
    %32 = vector.broadcast %31 : vector<1x256xf32> to vector<16x256xf32>
    %33 = arith.addf %30, %32 : vector<16x256xf32>
    %cst_15 = arith.constant 0.000000e+00 : f32
    %34 = vector.broadcast %cst_15 : f32 to vector<16x256xf32>
    %35 = arith.maximumf %33, %34 : vector<16x256xf32>
    %36 = arith.truncf %35 : vector<16x256xf32> to vector<16x256xbf16>
    %c0_16 = arith.constant 0 : index
    %c0_17 = arith.constant 0 : index
    %37 = vector.load %arg6[%c0_16, %c0_17] : memref<256x128xbf16, #tpu.memory_space<vmem>>, vector<256x128xbf16>
    %cst_18 = arith.constant dense<0.000000e+00> : vector<16x128xf32>
    %38 = tpu.matmul %36, %37, %cst_18 {dimension_numbers = #tpu.dot_dimension_numbers<[1], [0], [0], [1], [0, 0, 1, 1], [], []>} : vector<16x256xbf16>, vector<256x128xbf16>, vector<16x128xf32> -> vector<16x128xf32>
    %c0_19 = arith.constant 0 : index
    %c0_20 = arith.constant 0 : index
    %39 = vector.load %arg7[%c0_19, %c0_20] : memref<1x128xf32, #tpu.memory_space<vmem>>, vector<1x128xf32>
    %40 = vector.broadcast %39 : vector<1x128xf32> to vector<16x128xf32>
    %41 = arith.addf %38, %40 : vector<16x128xf32>
    %42 = arith.truncf %41 : vector<16x128xf32> to vector<16x128xbf16>
    %c0_21 = arith.constant 0 : index
    %c0_22 = arith.constant 0 : index
    %43 = vector.load %arg8[%c0_21, %c0_22] : memref<128x128xbf16, #tpu.memory_space<vmem>>, vector<128x128xbf16>
    %cst_23 = arith.constant dense<0.000000e+00> : vector<16x128xf32>
    %44 = tpu.matmul %42, %43, %cst_23 {dimension_numbers = #tpu.dot_dimension_numbers<[1], [0], [0], [1], [0, 0, 1, 1], [], []>} : vector<16x128xbf16>, vector<128x128xbf16>, vector<16x128xf32> -> vector<16x128xf32>
    %c0_24 = arith.constant 0 : index
    %c0_25 = arith.constant 0 : index
    %45 = vector.load %arg9[%c0_24, %c0_25] : memref<1x128xf32, #tpu.memory_space<vmem>>, vector<1x128xf32>
    %46 = vector.broadcast %45 : vector<1x128xf32> to vector<16x128xf32>
    %47 = arith.addf %44, %46 : vector<16x128xf32>
    %48 = vector.shape_cast %47 : vector<16x128xf32> to vector<2x8x128xf32>
    %c0_26 = arith.constant 0 : index
    %c0_27 = arith.constant 0 : index
    %c0_28 = arith.constant 0 : index
    %49 = vector.load %arg16[%c0_26, %c0_27, %c0_28] : memref<2x8x128xf32, #tpu.memory_space<vmem>>, vector<2x8x128xf32>
    tpu.vector_store %arg16[%c0_26, %c0_27, %c0_28], %48 {strides = array<i32>} : memref<2x8x128xf32, #tpu.memory_space<vmem>>, vector<2x8x128xf32>,
    %cst_29 = arith.constant 0.000000e+00 : f32
    %50 = vector.broadcast %cst_29 : f32 to vector<16x256xf32>
    %51 = arith.maximumf %9, %50 : vector<16x256xf32>
    %52 = arith.truncf %51 : vector<16x256xf32> to vector<16x256xbf16>
    %c0_30 = arith.constant 0 : index
    %c0_31 = arith.constant 0 : index
    %53 = vector.load %arg10[%c0_30, %c0_31] : memref<256x128xbf16, #tpu.memory_space<vmem>>, vector<256x128xbf16>
    %cst_32 = arith.constant dense<0.000000e+00> : vector<16x128xf32>
    %54 = tpu.matmul %52, %53, %cst_32 {dimension_numbers = #tpu.dot_dimension_numbers<[1], [0], [0], [1], [0, 0, 1, 1], [], []>} : vector<16x256xbf16>, vector<256x128xbf16>, vector<16x128xf32> -> vector<16x128xf32>
    %c0_33 = arith.constant 0 : index
    %c0_34 = arith.constant 0 : index
    %55 = vector.load %arg11[%c0_33, %c0_34] : memref<1x128xf32, #tpu.memory_space<vmem>>, vector<1x128xf32>
    %56 = vector.broadcast %55 : vector<1x128xf32> to vector<16x128xf32>
    %57 = arith.addf %54, %56 : vector<16x128xf32>
    %58 = arith.truncf %57 : vector<16x128xf32> to vector<16x128xbf16>
    %c0_35 = arith.constant 0 : index
    %c0_36 = arith.constant 0 : index
    %59 = vector.load %arg12[%c0_35, %c0_36] : memref<128x128xbf16, #tpu.memory_space<vmem>>, vector<128x128xbf16>
    %cst_37 = arith.constant dense<0.000000e+00> : vector<16x128xf32>
    %60 = tpu.matmul %58, %59, %cst_37 {dimension_numbers = #tpu.dot_dimension_numbers<[1], [0], [0], [1], [0, 0, 1, 1], [], []>} : vector<16x128xbf16>, vector<128x128xbf16>, vector<16x128xf32> -> vector<16x128xf32>
    %c0_38 = arith.constant 0 : index
    %c0_39 = arith.constant 0 : index
    %61 = vector.load %arg13[%c0_38, %c0_39] : memref<1x128xf32, #tpu.memory_space<vmem>>, vector<1x128xf32>
    %62 = vector.broadcast %61 : vector<1x128xf32> to vector<16x128xf32>
    %63 = arith.addf %60, %62 : vector<16x128xf32>
    %c0_40 = arith.constant 0 : index
    %c0_41 = arith.constant 0 : index
    %64 = vector.load %arg14[%c0_40, %c0_41] : memref<1x128xf32, #tpu.memory_space<vmem>>, vector<1x128xf32>
    %65 = vector.broadcast %64 : vector<1x128xf32> to vector<16x128xf32>
    %66 = arith.mulf %63, %65 : vector<16x128xf32>
    %67 = vector.shape_cast %66 : vector<16x128xf32> to vector<2x8x128xf32>
    %cst_42 = arith.constant dense<0.000000e+00> : vector<2x8xf32>
    %68 = vector.multi_reduction <add>, %67, %cst_42 [2] : vector<2x8x128xf32> to vector<2x8xf32>
    %c0_43 = arith.constant 0 : index
    %c0_44 = arith.constant 0 : index
    %69 = vector.load %arg15[%c0_43, %c0_44] : memref<1x1xf32, #tpu.memory_space<vmem>>, vector<1x1xf32>
    %70 = vector.broadcast %69 : vector<1x1xf32> to vector<2x8xf32>
    %71 = arith.addf %68, %70 : vector<2x8xf32>
    %cst_45 = arith.constant dense<0xFF800000> : vector<2xf32>
    %72 = vector.multi_reduction <maximumf>, %71, %cst_45 [1] : vector<2x8xf32> to vector<2xf32>
    %73 = vector.shape_cast %72 : vector<2xf32> to vector<2x1xf32>
    %74 = vector.broadcast %73 : vector<2x1xf32> to vector<2x8xf32>
    %75 = arith.subf %71, %74 : vector<2x8xf32>
    %76 = math.exp %75 : vector<2x8xf32>
    %cst_46 = arith.constant dense<0.000000e+00> : vector<2xf32>
    %77 = vector.multi_reduction <add>, %76, %cst_46 [1] : vector<2x8xf32> to vector<2xf32>
    %78 = vector.shape_cast %77 : vector<2xf32> to vector<2x1xf32>
    %79 = vector.broadcast %78 : vector<2x1xf32> to vector<2x8xf32>
    %80 = arith.divf %76, %79 : vector<2x8xf32>
    %c0_47 = arith.constant 0 : index
    %c0_48 = arith.constant 0 : index
    %81 = vector.load %arg17[%c0_47, %c0_48] : memref<2x8xf32, #tpu.memory_space<vmem>>, vector<2x8xf32>
    tpu.vector_store %arg17[%c0_47, %c0_48], %80 {strides = array<i32>} : memref<2x8xf32, #tpu.memory_space<vmem>>, vector<2x8xf32>,
    return
  }
  func.func @transform_0(%arg0: i32) -> (i32, i32, i32) {
    %c0_i32 = arith.constant 0 : i32
    %c0_i32_0 = arith.constant 0 : i32
    %c0_i32_1 = arith.constant 0 : i32
    return %arg0, %c0_i32, %c0_i32_0 : i32, i32, i32
  }
  func.func @transform_1(%arg0: i32) -> (i32, i32) {
    %c0_i32 = arith.constant 0 : i32
    %c0_i32_0 = arith.constant 0 : i32
    %c0_i32_1 = arith.constant 0 : i32
    return %c0_i32, %c0_i32_0 : i32, i32
  }
  func.func @transform_2(%arg0: i32) -> (i32, i32) {
    %c0_i32 = arith.constant 0 : i32
    %c0_i32_0 = arith.constant 0 : i32
    %c0_i32_1 = arith.constant 0 : i32
    return %c0_i32, %c0_i32_0 : i32, i32
  }
  func.func @transform_3(%arg0: i32) -> (i32, i32) {
    %c0_i32 = arith.constant 0 : i32
    %c0_i32_0 = arith.constant 0 : i32
    %c0_i32_1 = arith.constant 0 : i32
    return %c0_i32, %c0_i32_0 : i32, i32
  }
  func.func @transform_4(%arg0: i32) -> (i32, i32) {
    %c0_i32 = arith.constant 0 : i32
    %c0_i32_0 = arith.constant 0 : i32
    %c0_i32_1 = arith.constant 0 : i32
    return %c0_i32, %c0_i32_0 : i32, i32
  }
  func.func @transform_5(%arg0: i32) -> (i32, i32) {
    %c0_i32 = arith.constant 0 : i32
    %c0_i32_0 = arith.constant 0 : i32
    %c0_i32_1 = arith.constant 0 : i32
    return %c0_i32, %c0_i32_0 : i32, i32
  }
  func.func @transform_6(%arg0: i32) -> (i32, i32) {
    %c0_i32 = arith.constant 0 : i32
    %c0_i32_0 = arith.constant 0 : i32
    %c0_i32_1 = arith.constant 0 : i32
    return %c0_i32, %c0_i32_0 : i32, i32
  }
  func.func @transform_7(%arg0: i32) -> (i32, i32) {
    %c0_i32 = arith.constant 0 : i32
    %c0_i32_0 = arith.constant 0 : i32
    %c0_i32_1 = arith.constant 0 : i32
    return %c0_i32, %c0_i32_0 : i32, i32
  }
  func.func @transform_8(%arg0: i32) -> (i32, i32) {
    %c0_i32 = arith.constant 0 : i32
    %c0_i32_0 = arith.constant 0 : i32
    %c0_i32_1 = arith.constant 0 : i32
    return %c0_i32, %c0_i32_0 : i32, i32
  }
  func.func @transform_9(%arg0: i32) -> (i32, i32) {
    %c0_i32 = arith.constant 0 : i32
    %c0_i32_0 = arith.constant 0 : i32
    %c0_i32_1 = arith.constant 0 : i32
    return %c0_i32, %c0_i32_0 : i32, i32
  }
  func.func @transform_10(%arg0: i32) -> (i32, i32) {
    %c0_i32 = arith.constant 0 : i32
    %c0_i32_0 = arith.constant 0 : i32
    %c0_i32_1 = arith.constant 0 : i32
    return %c0_i32, %c0_i32_0 : i32, i32
  }
  func.func @transform_11(%arg0: i32) -> (i32, i32) {
    %c0_i32 = arith.constant 0 : i32
    %c0_i32_0 = arith.constant 0 : i32
    %c0_i32_1 = arith.constant 0 : i32
    return %c0_i32, %c0_i32_0 : i32, i32
  }
  func.func @transform_12(%arg0: i32) -> (i32, i32) {
    %c0_i32 = arith.constant 0 : i32
    %c0_i32_0 = arith.constant 0 : i32
    %c0_i32_1 = arith.constant 0 : i32
    return %c0_i32, %c0_i32_0 : i32, i32
  }
  func.func @transform_13(%arg0: i32) -> (i32, i32) {
    %c0_i32 = arith.constant 0 : i32
    %c0_i32_0 = arith.constant 0 : i32
    %c0_i32_1 = arith.constant 0 : i32
    return %c0_i32, %c0_i32_0 : i32, i32
  }
  func.func @transform_14(%arg0: i32) -> (i32, i32) {
    %c0_i32 = arith.constant 0 : i32
    %c0_i32_0 = arith.constant 0 : i32
    %c0_i32_1 = arith.constant 0 : i32
    return %c0_i32, %c0_i32_0 : i32, i32
  }
  func.func @transform_15(%arg0: i32) -> (i32, i32, i32) {
    %c0_i32 = arith.constant 0 : i32
    %c0_i32_0 = arith.constant 0 : i32
    %c0_i32_1 = arith.constant 0 : i32
    return %arg0, %c0_i32, %c0_i32_0 : i32, i32, i32
  }
  func.func @transform_16(%arg0: i32) -> (i32, i32) {
    %c0_i32 = arith.constant 0 : i32
    %c0_i32_0 = arith.constant 0 : i32
    return %arg0, %c0_i32 : i32, i32
  }
}

module attributes {stable_mosaic.version = 11 : i64} {
  func.func @_fused_heads_kernel(%arg0: i32, %arg1: memref<2x8x128xf32, #tpu.memory_space<vmem>>, %arg2: memref<128x512xbf16, #tpu.memory_space<vmem>>, %arg3: memref<1x512xf32, #tpu.memory_space<vmem>>, %arg4: memref<1x256xf32, #tpu.memory_space<vmem>>, %arg5: memref<1x256xf32, #tpu.memory_space<vmem>>, %arg6: memref<256x128xbf16, #tpu.memory_space<vmem>>, %arg7: memref<1x128xf32, #tpu.memory_space<vmem>>, %arg8: memref<128x128xbf16, #tpu.memory_space<vmem>>, %arg9: memref<1x128xf32, #tpu.memory_space<vmem>>, %arg10: memref<256x128xbf16, #tpu.memory_space<vmem>>, %arg11: memref<1x128xf32, #tpu.memory_space<vmem>>, %arg12: memref<128x128xbf16, #tpu.memory_space<vmem>>, %arg13: memref<1x128xf32, #tpu.memory_space<vmem>>, %arg14: memref<1x128xf32, #tpu.memory_space<vmem>>, %arg15: memref<1x1xf32, #tpu.memory_space<vmem>>, %arg16: memref<2x8x128xf32, #tpu.memory_space<vmem>>, %arg17: memref<2x8xf32, #tpu.memory_space<vmem>>) attributes {dimension_semantics = [#tpu.dimension_semantics<parallel>], iteration_bounds = array<i64: 1>, scalar_prefetch = 0 : i64, scratch_operands = 0 : i64, tpu.core_type = #tpu.core_type<tc>, window_params = [{transform_indices = @transform_0, window_bounds = array<i64: 2, 8, 128>}, {pipeline_mode = #tpu.pipeline_mode<synchronous>, transform_indices = @transform_1, window_bounds = array<i64: 128, 512>}, {pipeline_mode = #tpu.pipeline_mode<synchronous>, transform_indices = @transform_2, window_bounds = array<i64: 1, 512>}, {pipeline_mode = #tpu.pipeline_mode<synchronous>, transform_indices = @transform_3, window_bounds = array<i64: 1, 256>}, {pipeline_mode = #tpu.pipeline_mode<synchronous>, transform_indices = @transform_4, window_bounds = array<i64: 1, 256>}, {pipeline_mode = #tpu.pipeline_mode<synchronous>, transform_indices = @transform_5, window_bounds = array<i64: 256, 128>}, {pipeline_mode = #tpu.pipeline_mode<synchronous>, transform_indices = @transform_6, window_bounds = array<i64: 1, 128>}, {pipeline_mode = #tpu.pipeline_mode<synchronous>, transform_indices = @transform_7, window_bounds = array<i64: 128, 128>}, {pipeline_mode = #tpu.pipeline_mode<synchronous>, transform_indices = @transform_8, window_bounds = array<i64: 1, 128>}, {pipeline_mode = #tpu.pipeline_mode<synchronous>, transform_indices = @transform_9, window_bounds = array<i64: 256, 128>}, {pipeline_mode = #tpu.pipeline_mode<synchronous>, transform_indices = @transform_10, window_bounds = array<i64: 1, 128>}, {pipeline_mode = #tpu.pipeline_mode<synchronous>, transform_indices = @transform_11, window_bounds = array<i64: 128, 128>}, {pipeline_mode = #tpu.pipeline_mode<synchronous>, transform_indices = @transform_12, window_bounds = array<i64: 1, 128>}, {pipeline_mode = #tpu.pipeline_mode<synchronous>, transform_indices = @transform_13, window_bounds = array<i64: 1, 128>}, {pipeline_mode = #tpu.pipeline_mode<synchronous>, transform_indices = @transform_14, window_bounds = array<i64: 1, 1>}, {transform_indices = @transform_15, window_bounds = array<i64: 2, 8, 128>}, {transform_indices = @transform_16, window_bounds = array<i64: 2, 8>}]} {
    %c0 = arith.constant 0 : index
    %c0_0 = arith.constant 0 : index
    %c0_1 = arith.constant 0 : index
    %0 = vector.load %arg1[%c0, %c0_0, %c0_1] : memref<2x8x128xf32, #tpu.memory_space<vmem>>, vector<2x8x128xf32>
    %1 = vector.shape_cast %0 : vector<2x8x128xf32> to vector<16x128xf32>
    %2 = arith.truncf %1 : vector<16x128xf32> to vector<16x128xbf16>
    %c0_2 = arith.constant 0 : index
    %c0_3 = arith.constant 0 : index
    %3 = vector.load %arg2[%c0_2, %c0_3] : memref<128x512xbf16, #tpu.memory_space<vmem>>, vector<128x512xbf16>
    %cst = arith.constant dense<0.000000e+00> : vector<16x512xf32>
    %4 = tpu.matmul %2, %3, %cst {dimension_numbers = #tpu.dot_dimension_numbers<[1], [0], [0], [1], [0, 0, 1, 1], [], []>} : vector<16x128xbf16>, vector<128x512xbf16>, vector<16x512xf32> -> vector<16x512xf32>
    %c0_4 = arith.constant 0 : index
    %c0_5 = arith.constant 0 : index
    %5 = vector.load %arg3[%c0_4, %c0_5] : memref<1x512xf32, #tpu.memory_space<vmem>>, vector<1x512xf32>
    %6 = vector.broadcast %5 : vector<1x512xf32> to vector<16x512xf32>
    %7 = arith.addf %4, %6 : vector<16x512xf32>
    %8 = vector.extract_strided_slice %7 {offsets = [0, 0], sizes = [16, 256], strides = [1, 1]} : vector<16x512xf32> to vector<16x256xf32>
    %9 = vector.extract_strided_slice %7 {offsets = [0, 256], sizes = [16, 256], strides = [1, 1]} : vector<16x512xf32> to vector<16x256xf32>
    %cst_6 = arith.constant dense<0.000000e+00> : vector<16xf32>
    %10 = vector.multi_reduction <add>, %8, %cst_6 [1] : vector<16x256xf32> to vector<16xf32>
    %11 = vector.shape_cast %10 : vector<16xf32> to vector<16x1xf32>
    %cst_7 = arith.constant 2.560000e+02 : f32
    %12 = vector.broadcast %cst_7 : f32 to vector<16x1xf32>
    %13 = arith.divf %11, %12 : vector<16x1xf32>
    %14 = vector.broadcast %13 : vector<16x1xf32> to vector<16x256xf32>
    %15 = arith.subf %8, %14 : vector<16x256xf32>
    %16 = arith.mulf %15, %15 : vector<16x256xf32>
    %cst_8 = arith.constant dense<0.000000e+00> : vector<16xf32>
    %17 = vector.multi_reduction <add>, %16, %cst_8 [1] : vector<16x256xf32> to vector<16xf32>
    %18 = vector.shape_cast %17 : vector<16xf32> to vector<16x1xf32>
    %cst_9 = arith.constant 2.560000e+02 : f32
    %19 = vector.broadcast %cst_9 : f32 to vector<16x1xf32>
    %20 = arith.divf %18, %19 : vector<16x1xf32>
    %21 = vector.broadcast %13 : vector<16x1xf32> to vector<16x256xf32>
    %22 = arith.subf %8, %21 : vector<16x256xf32>
    %cst_10 = arith.constant 9.99999974E-6 : f32
    %23 = vector.broadcast %cst_10 : f32 to vector<16x1xf32>
    %24 = arith.addf %20, %23 : vector<16x1xf32>
    %25 = math.rsqrt %24 : vector<16x1xf32>
    %26 = vector.broadcast %25 : vector<16x1xf32> to vector<16x256xf32>
    %27 = arith.mulf %22, %26 : vector<16x256xf32>
    %c0_11 = arith.constant 0 : index
    %c0_12 = arith.constant 0 : index
    %28 = vector.load %arg4[%c0_11, %c0_12] : memref<1x256xf32, #tpu.memory_space<vmem>>, vector<1x256xf32>
    %29 = vector.broadcast %28 : vector<1x256xf32> to vector<16x256xf32>
    %30 = arith.mulf %27, %29 : vector<16x256xf32>
    %c0_13 = arith.constant 0 : index
    %c0_14 = arith.constant 0 : index
    %31 = vector.load %arg5[%c0_13, %c0_14] : memref<1x256xf32, #tpu.memory_space<vmem>>, vector<1x256xf32>
    %32 = vector.broadcast %31 : vector<1x256xf32> to vector<16x256xf32>
    %33 = arith.addf %30, %32 : vector<16x256xf32>
    %cst_15 = arith.constant 0.000000e+00 : f32
    %34 = vector.broadcast %cst_15 : f32 to vector<16x256xf32>
    %35 = arith.maximumf %33, %34 : vector<16x256xf32>
    %36 = arith.truncf %35 : vector<16x256xf32> to vector<16x256xbf16>
    %c0_16 = arith.constant 0 : index
    %c0_17 = arith.constant 0 : index
    %37 = vector.load %arg6[%c0_16, %c0_17] : memref<256x128xbf16, #tpu.memory_space<vmem>>, vector<256x128xbf16>
    %cst_18 = arith.constant dense<0.000000e+00> : vector<16x128xf32>
    %38 = tpu.matmul %36, %37, %cst_18 {dimension_numbers = #tpu.dot_dimension_numbers<[1], [0], [0], [1], [0, 0, 1, 1], [], []>} : vector<16x256xbf16>, vector<256x128xbf16>, vector<16x128xf32> -> vector<16x128xf32>
    %c0_19 = arith.constant 0 : index
    %c0_20 = arith.constant 0 : index
    %39 = vector.load %arg7[%c0_19, %c0_20] : memref<1x128xf32, #tpu.memory_space<vmem>>, vector<1x128xf32>
    %40 = vector.broadcast %39 : vector<1x128xf32> to vector<16x128xf32>
    %41 = arith.addf %38, %40 : vector<16x128xf32>
    %42 = arith.truncf %41 : vector<16x128xf32> to vector<16x128xbf16>
    %c0_21 = arith.constant 0 : index
    %c0_22 = arith.constant 0 : index
    %43 = vector.load %arg8[%c0_21, %c0_22] : memref<128x128xbf16, #tpu.memory_space<vmem>>, vector<128x128xbf16>
    %cst_23 = arith.constant dense<0.000000e+00> : vector<16x128xf32>
    %44 = tpu.matmul %42, %43, %cst_23 {dimension_numbers = #tpu.dot_dimension_numbers<[1], [0], [0], [1], [0, 0, 1, 1], [], []>} : vector<16x128xbf16>, vector<128x128xbf16>, vector<16x128xf32> -> vector<16x128xf32>
    %c0_24 = arith.constant 0 : index
    %c0_25 = arith.constant 0 : index
    %45 = vector.load %arg9[%c0_24, %c0_25] : memref<1x128xf32, #tpu.memory_space<vmem>>, vector<1x128xf32>
    %46 = vector.broadcast %45 : vector<1x128xf32> to vector<16x128xf32>
    %47 = arith.addf %44, %46 : vector<16x128xf32>
    %48 = vector.shape_cast %47 : vector<16x128xf32> to vector<2x8x128xf32>
    %c0_26 = arith.constant 0 : index
    %c0_27 = arith.constant 0 : index
    %c0_28 = arith.constant 0 : index
    %49 = vector.load %arg16[%c0_26, %c0_27, %c0_28] : memref<2x8x128xf32, #tpu.memory_space<vmem>>, vector<2x8x128xf32>
    tpu.vector_store %arg16[%c0_26, %c0_27, %c0_28], %48 {strides = array<i32>} : memref<2x8x128xf32, #tpu.memory_space<vmem>>, vector<2x8x128xf32>,
    %cst_29 = arith.constant 0.000000e+00 : f32
    %50 = vector.broadcast %cst_29 : f32 to vector<16x256xf32>
    %51 = arith.maximumf %9, %50 : vector<16x256xf32>
    %52 = arith.truncf %51 : vector<16x256xf32> to vector<16x256xbf16>
    %c0_30 = arith.constant 0 : index
    %c0_31 = arith.constant 0 : index
    %53 = vector.load %arg10[%c0_30, %c0_31] : memref<256x128xbf16, #tpu.memory_space<vmem>>, vector<256x128xbf16>
    %cst_32 = arith.constant dense<0.000000e+00> : vector<16x128xf32>
    %54 = tpu.matmul %52, %53, %cst_32 {dimension_numbers = #tpu.dot_dimension_numbers<[1], [0], [0], [1], [0, 0, 1, 1], [], []>} : vector<16x256xbf16>, vector<256x128xbf16>, vector<16x128xf32> -> vector<16x128xf32>
    %c0_33 = arith.constant 0 : index
    %c0_34 = arith.constant 0 : index
    %55 = vector.load %arg11[%c0_33, %c0_34] : memref<1x128xf32, #tpu.memory_space<vmem>>, vector<1x128xf32>
    %56 = vector.broadcast %55 : vector<1x128xf32> to vector<16x128xf32>
    %57 = arith.addf %54, %56 : vector<16x128xf32>
    %58 = arith.truncf %57 : vector<16x128xf32> to vector<16x128xbf16>
    %c0_35 = arith.constant 0 : index
    %c0_36 = arith.constant 0 : index
    %59 = vector.load %arg12[%c0_35, %c0_36] : memref<128x128xbf16, #tpu.memory_space<vmem>>, vector<128x128xbf16>
    %cst_37 = arith.constant dense<0.000000e+00> : vector<16x128xf32>
    %60 = tpu.matmul %58, %59, %cst_37 {dimension_numbers = #tpu.dot_dimension_numbers<[1], [0], [0], [1], [0, 0, 1, 1], [], []>} : vector<16x128xbf16>, vector<128x128xbf16>, vector<16x128xf32> -> vector<16x128xf32>
    %c0_38 = arith.constant 0 : index
    %c0_39 = arith.constant 0 : index
    %61 = vector.load %arg13[%c0_38, %c0_39] : memref<1x128xf32, #tpu.memory_space<vmem>>, vector<1x128xf32>
    %62 = vector.broadcast %61 : vector<1x128xf32> to vector<16x128xf32>
    %63 = arith.addf %60, %62 : vector<16x128xf32>
    %c0_40 = arith.constant 0 : index
    %c0_41 = arith.constant 0 : index
    %64 = vector.load %arg14[%c0_40, %c0_41] : memref<1x128xf32, #tpu.memory_space<vmem>>, vector<1x128xf32>
    %65 = vector.broadcast %64 : vector<1x128xf32> to vector<16x128xf32>
    %66 = arith.mulf %63, %65 : vector<16x128xf32>
    %67 = vector.shape_cast %66 : vector<16x128xf32> to vector<2x8x128xf32>
    %cst_42 = arith.constant dense<0.000000e+00> : vector<2x8xf32>
    %68 = vector.multi_reduction <add>, %67, %cst_42 [2] : vector<2x8x128xf32> to vector<2x8xf32>
    %c0_43 = arith.constant 0 : index
    %c0_44 = arith.constant 0 : index
    %69 = vector.load %arg15[%c0_43, %c0_44] : memref<1x1xf32, #tpu.memory_space<vmem>>, vector<1x1xf32>
    %70 = vector.broadcast %69 : vector<1x1xf32> to vector<2x8xf32>
    %71 = arith.addf %68, %70 : vector<2x8xf32>
    %cst_45 = arith.constant dense<0xFF800000> : vector<2xf32>
    %72 = vector.multi_reduction <maximumf>, %71, %cst_45 [1] : vector<2x8xf32> to vector<2xf32>
    %73 = vector.shape_cast %72 : vector<2xf32> to vector<2x1xf32>
    %74 = vector.broadcast %73 : vector<2x1xf32> to vector<2x8xf32>
    %75 = arith.subf %71, %74 : vector<2x8xf32>
    %76 = math.exp %75 : vector<2x8xf32>
    %cst_46 = arith.constant dense<0.000000e+00> : vector<2xf32>
    %77 = vector.multi_reduction <add>, %76, %cst_46 [1] : vector<2x8xf32> to vector<2xf32>
    %78 = vector.shape_cast %77 : vector<2xf32> to vector<2x1xf32>
    %79 = vector.broadcast %78 : vector<2x1xf32> to vector<2x8xf32>
    %80 = arith.divf %76, %79 : vector<2x8xf32>
    %c0_47 = arith.constant 0 : index
    %c0_48 = arith.constant 0 : index
    %81 = vector.load %arg17[%c0_47, %c0_48] : memref<2x8xf32, #tpu.memory_space<vmem>>, vector<2x8xf32>
    tpu.vector_store %arg17[%c0_47, %c0_48], %80 {strides = array<i32>} : memref<2x8xf32, #tpu.memory_space<vmem>>, vector<2x8xf32>,
    return
  }
  func.func @transform_0(%arg0: i32) -> (i32, i32, i32) {
    %c0_i32 = arith.constant 0 : i32
    %c0_i32_0 = arith.constant 0 : i32
    %c0_i32_1 = arith.constant 0 : i32
    return %arg0, %c0_i32, %c0_i32_0 : i32, i32, i32
  }
  func.func @transform_1(%arg0: i32) -> (i32, i32) {
    %c0_i32 = arith.constant 0 : i32
    %c0_i32_0 = arith.constant 0 : i32
    %c0_i32_1 = arith.constant 0 : i32
    return %c0_i32, %c0_i32_0 : i32, i32
  }
  func.func @transform_2(%arg0: i32) -> (i32, i32) {
    %c0_i32 = arith.constant 0 : i32
    %c0_i32_0 = arith.constant 0 : i32
    %c0_i32_1 = arith.constant 0 : i32
    return %c0_i32, %c0_i32_0 : i32, i32
  }
  func.func @transform_3(%arg0: i32) -> (i32, i32) {
    %c0_i32 = arith.constant 0 : i32
    %c0_i32_0 = arith.constant 0 : i32
    %c0_i32_1 = arith.constant 0 : i32
    return %c0_i32, %c0_i32_0 : i32, i32
  }
  func.func @transform_4(%arg0: i32) -> (i32, i32) {
    %c0_i32 = arith.constant 0 : i32
    %c0_i32_0 = arith.constant 0 : i32
    %c0_i32_1 = arith.constant 0 : i32
    return %c0_i32, %c0_i32_0 : i32, i32
  }
  func.func @transform_5(%arg0: i32) -> (i32, i32) {
    %c0_i32 = arith.constant 0 : i32
    %c0_i32_0 = arith.constant 0 : i32
    %c0_i32_1 = arith.constant 0 : i32
    return %c0_i32, %c0_i32_0 : i32, i32
  }
  func.func @transform_6(%arg0: i32) -> (i32, i32) {
    %c0_i32 = arith.constant 0 : i32
    %c0_i32_0 = arith.constant 0 : i32
    %c0_i32_1 = arith.constant 0 : i32
    return %c0_i32, %c0_i32_0 : i32, i32
  }
  func.func @transform_7(%arg0: i32) -> (i32, i32) {
    %c0_i32 = arith.constant 0 : i32
    %c0_i32_0 = arith.constant 0 : i32
    %c0_i32_1 = arith.constant 0 : i32
    return %c0_i32, %c0_i32_0 : i32, i32
  }
  func.func @transform_8(%arg0: i32) -> (i32, i32) {
    %c0_i32 = arith.constant 0 : i32
    %c0_i32_0 = arith.constant 0 : i32
    %c0_i32_1 = arith.constant 0 : i32
    return %c0_i32, %c0_i32_0 : i32, i32
  }
  func.func @transform_9(%arg0: i32) -> (i32, i32) {
    %c0_i32 = arith.constant 0 : i32
    %c0_i32_0 = arith.constant 0 : i32
    %c0_i32_1 = arith.constant 0 : i32
    return %c0_i32, %c0_i32_0 : i32, i32
  }
  func.func @transform_10(%arg0: i32) -> (i32, i32) {
    %c0_i32 = arith.constant 0 : i32
    %c0_i32_0 = arith.constant 0 : i32
    %c0_i32_1 = arith.constant 0 : i32
    return %c0_i32, %c0_i32_0 : i32, i32
  }
  func.func @transform_11(%arg0: i32) -> (i32, i32) {
    %c0_i32 = arith.constant 0 : i32
    %c0_i32_0 = arith.constant 0 : i32
    %c0_i32_1 = arith.constant 0 : i32
    return %c0_i32, %c0_i32_0 : i32, i32
  }
  func.func @transform_12(%arg0: i32) -> (i32, i32) {
    %c0_i32 = arith.constant 0 : i32
    %c0_i32_0 = arith.constant 0 : i32
    %c0_i32_1 = arith.constant 0 : i32
    return %c0_i32, %c0_i32_0 : i32, i32
  }
  func.func @transform_13(%arg0: i32) -> (i32, i32) {
    %c0_i32 = arith.constant 0 : i32
    %c0_i32_0 = arith.constant 0 : i32
    %c0_i32_1 = arith.constant 0 : i32
    return %c0_i32, %c0_i32_0 : i32, i32
  }
  func.func @transform_14(%arg0: i32) -> (i32, i32) {
    %c0_i32 = arith.constant 0 : i32
    %c0_i32_0 = arith.constant 0 : i32
    %c0_i32_1 = arith.constant 0 : i32
    return %c0_i32, %c0_i32_0 : i32, i32
  }
  func.func @transform_15(%arg0: i32) -> (i32, i32, i32) {
    %c0_i32 = arith.constant 0 : i32
    %c0_i32_0 = arith.constant 0 : i32
    %c0_i32_1 = arith.constant 0 : i32
    return %arg0, %c0_i32, %c0_i32_0 : i32, i32, i32
  }
  func.func @transform_16(%arg0: i32) -> (i32, i32) {
    %c0_i32 = arith.constant 0 : i32
    %c0_i32_0 = arith.constant 0 : i32
    return %arg0, %c0_i32 : i32, i32
  }
}

</mosaic_0001>

<llo_original>
// kernel: tpu_custom_call.1
$region0: #{tpu_custom_call.1}
  #allocation0 [shape = 'u32[]', space=smem, size = 0x4, offset = 0x4, fixed_abs, tag = 'smem constant byte address 0x4 - core index']
  #allocation1 [shape = 'u32[72,128]{1,0:T(1,128)}', space=vmem, size = 0x9000, scoped, tag = 'internal scratch']
  #allocation2 [shape = 'f32[1,1]{1,0:T(1,128)S(1)}', space=vmem, size = 0x200, scoped, tag = 'scoped memory for tpu_custom_call.1']
  %s0 = inlined_call_operand.hbm [shape: f32[2,8,128], index: 0, kind: input, shape index: {}]
  %s1 = inlined_call_operand.hbm [shape: bf16[128,512], index: 1, kind: input, shape index: {}]
  %s2 = inlined_call_operand.hbm [shape: f32[1,512], index: 2, kind: input, shape index: {}]
  %s3 = inlined_call_operand.vmem [shape: f32[1,256], index: 3, kind: input, shape index: {}]
  %s4 = inlined_call_operand.vmem [shape: f32[1,256], index: 4, kind: input, shape index: {}]
  %s5 = inlined_call_operand.hbm [shape: bf16[256,128], index: 5, kind: input, shape index: {}]
  %s6 = inlined_call_operand.vmem [shape: f32[1,128], index: 6, kind: input, shape index: {}]
  %s7 = inlined_call_operand.hbm [shape: bf16[128,128], index: 7, kind: input, shape index: {}]
  %s8 = inlined_call_operand.vmem [shape: f32[1,128], index: 8, kind: input, shape index: {}]
  %s9 = inlined_call_operand.hbm [shape: bf16[256,128], index: 9, kind: input, shape index: {}]
  %s10 = inlined_call_operand.vmem [shape: f32[1,128], index: 10, kind: input, shape index: {}]
  %s11 = inlined_call_operand.hbm [shape: bf16[128,128], index: 11, kind: input, shape index: {}]
  %s12 = inlined_call_operand.vmem [shape: f32[1,128], index: 12, kind: input, shape index: {}]
  %s13 = inlined_call_operand.vmem [shape: f32[1,128], index: 13, kind: input, shape index: {}]
  %s14 = inlined_call_operand.<no memory space> [shape: f32[1,1], index: 14, kind: input, shape index: {}]
  %s15 = inlined_call_operand.hbm [shape: f32[2,8,128], index: 15, kind: output, shape index: {0}]
  %s16 = inlined_call_operand.hbm [shape: f32[2,8], index: 16, kind: output, shape index: {1}]
  %17 = xla_tuple %s15, %s16
  %s18 = sld [smem:[#allocation0]]
  $region106: #{tpu_custom_call.1} parent=0
    _
  %s20 = ssub.s32 1, %s18
  %s21 = scalar_select 0, %s20, %s18
  %v22 = vstv %s14
  %23 = vst [vmem:[#allocation2] sm:$0x1] %v22
  $region1: #{tpu_custom_call.1} parent=0
    #allocation3 [shape = 'u8[8192]{0}', space=vmem, size = 0x2000, scoped, tag = 'input window, operand 0, single buffered']
    #allocation4 [shape = 's32[1]{0}', space=sflag, size = 0x4, scoped, tag = 'scoped memory for tpu_custom_call.1']
    #allocation5 [shape = 's32[1]{0}', space=sflag, size = 0x4, scoped, tag = 'scoped memory for tpu_custom_call.1']
    #allocation6 [shape = 'u8[131072]{0}', space=vmem, size = 0x20000, scoped, tag = 'input window, operand 1, single buffered']
    #allocation7 [shape = 's32[1]{0}', space=sflag, size = 0x4, scoped, tag = 'scoped memory for tpu_custom_call.1']
    #allocation8 [shape = 'u8[2048]{0}', space=vmem, size = 0x800, scoped, tag = 'input window, operand 2, single buffered']
    #allocation9 [shape = 'u8[65536]{0}', space=vmem, size = 0x10000, scoped, tag = 'input window, operand 5, single buffered']
    #allocation10 [shape = 's32[1]{0}', space=sflag, size = 0x4, scoped, tag = 'scoped memory for tpu_custom_call.1']
    #allocation11 [shape = 'u8[32768]{0}', space=vmem, size = 0x8000, scoped, tag = 'input window, operand 7, single buffered']
    #allocation12 [shape = 'u8[65536]{0}', space=vmem, size = 0x10000, scoped, tag = 'input window, operand 9, single buffered']
    #allocation13 [shape = 's32[1]{0}', space=sflag, size = 0x4, scoped, tag = 'scoped memory for tpu_custom_call.1']
    #allocation14 [shape = 'u8[32768]{0}', space=vmem, size = 0x8000, scoped, tag = 'input window, operand 11, single buffered']
    #allocation15 [shape = 'u8[8192]{0}', space=vmem, size = 0x2000, scoped, tag = 'output window, operand 0, single buffered']
    #allocation16 [shape = 'u8[1024]{0}', space=vmem, size = 0x400, scoped, tag = 'output window, operand 1, single buffered']
    #allocation17 [shape = 's32[1]{0}', space=sflag, size = 0x4, scoped, tag = 'scoped memory for tpu_custom_call.1']
    %24 = vsyncpa [#allocation4], 0
    %25 = vsyncpa [#allocation7], 0
    %26 = vsyncpa [#allocation10], 0
    %27 = vsyncpa [#allocation13], 0
    %28 = vsyncpa [#allocation5], 0
    %29 = vsyncpa [#allocation17], 0
    // Predicated region
    $region2: #{tpu_custom_call.1} parent=1 // pred_check
      _
    $region3: #{tpu_custom_call.1} parent=1 // pred_check_branch
      %31 = sbr.rel (0) target = $region5
    $region4: #{tpu_custom_call.1} parent=1 // pred_region
      %33 = vsyncadd [#allocation4], 0
      %s34 = sshll.u32 %s0, 4
      %s35 = int_to_ptr.hbm [resolvable:$true] %s34
      %s36 = sshll.u32 [#allocation3], 4
      %s37 = int_to_ptr.vmem [resolvable:$true] %s36
      %42 = dma.hbm_to_vmem [thread:$0]  %s35, 256, %s37, [#allocation4], 128, 128, 8
    $region5: #{tpu_custom_call.1} parent=1 // pred_fallthru
      _
    // Predicated region
    $region6: #{tpu_custom_call.1} parent=1 // pred_check
      _
    $region7: #{tpu_custom_call.1} parent=1 // pred_check_branch
      %44 = sbr.rel (0) target = $region9
    $region8: #{tpu_custom_call.1} parent=1 // pred_region
      %46 = vsyncadd [#allocation7], 0
      %s47 = sshll.u32 %s1, 4
      %s48 = int_to_ptr.hbm [resolvable:$true] %s47
      %s49 = sshll.u32 [#allocation6], 4
      %s50 = int_to_ptr.vmem [resolvable:$true] %s49
      %55 = dma.hbm_to_vmem [thread:$0]  %s48, 4096, %s50, [#allocation7], 256, 256, 16
    $region9: #{tpu_custom_call.1} parent=1 // pred_fallthru
      _
    // Predicated region
    $region10: #{tpu_custom_call.1} parent=1 // pred_check
      _
    $region11: #{tpu_custom_call.1} parent=1 // pred_check_branch
      %57 = sbr.rel (0) target = $region13
    $region12: #{tpu_custom_call.1} parent=1 // pred_region
      %59 = vsyncadd [#allocation7], 0
      %s61 = sshll.u32 %s2, 4
      %s62 = int_to_ptr.hbm [resolvable:$true] %s61
      %s63 = sshll.u32 [#allocation8], 4
      %s64 = int_to_ptr.vmem [resolvable:$true] %s63
      %66 = dma.hbm_to_vmem [thread:$0]  %s62, 64, %s64, [#allocation7]
    $region13: #{tpu_custom_call.1} parent=1 // pred_fallthru
      _
    // Predicated region
    $region14: #{tpu_custom_call.1} parent=1 // pred_check
      _
    $region15: #{tpu_custom_call.1} parent=1 // pred_check_branch
      %68 = sbr.rel (0) target = $region17
    $region16: #{tpu_custom_call.1} parent=1 // pred_region
      _
    $region17: #{tpu_custom_call.1} parent=1 // pred_fallthru
      _
    // Predicated region
    $region18: #{tpu_custom_call.1} parent=1 // pred_check
      _
    $region19: #{tpu_custom_call.1} parent=1 // pred_check_branch
      %70 = sbr.rel (0) target = $region21
    $region20: #{tpu_custom_call.1} parent=1 // pred_region
      _
    $region21: #{tpu_custom_call.1} parent=1 // pred_fallthru
      _
    // Predicated region
    $region22: #{tpu_custom_call.1} parent=1 // pred_check
      _
    $region23: #{tpu_custom_call.1} parent=1 // pred_check_branch
      %72 = sbr.rel (0) target = $region25
    $region24: #{tpu_custom_call.1} parent=1 // pred_region
      %74 = vsyncadd [#allocation10], 0
      %s75 = sshll.u32 %s5, 4
      %s76 = int_to_ptr.hbm [resolvable:$true] %s75
      %s77 = sshll.u32 [#allocation9], 4
      %s78 = int_to_ptr.vmem [resolvable:$true] %s77
      %83 = dma.hbm_to_vmem [thread:$0]  %s76, 2048, %s78, [#allocation10], 64, 64, 4
    $region25: #{tpu_custom_call.1} parent=1 // pred_fallthru
      _
    // Predicated region
    $region26: #{tpu_custom_call.1} parent=1 // pred_check
      _
    $region27: #{tpu_custom_call.1} parent=1 // pred_check_branch
      %85 = sbr.rel (0) target = $region29
    $region28: #{tpu_custom_call.1} parent=1 // pred_region
      _
    $region29: #{tpu_custom_call.1} parent=1 // pred_fallthru
      _
    // Predicated region
    $region30: #{tpu_custom_call.1} parent=1 // pred_check
      _
    $region31: #{tpu_custom_call.1} parent=1 // pred_check_branch
      %87 = sbr.rel (0) target = $region33
    $region32: #{tpu_custom_call.1} parent=1 // pred_region
      %89 = vsyncadd [#allocation10], 0
      %s90 = sshll.u32 %s7, 4
      %s91 = int_to_ptr.hbm [resolvable:$true] %s90
      %s92 = sshll.u32 [#allocation11], 4
      %s93 = int_to_ptr.vmem [resolvable:$true] %s92
      %98 = dma.hbm_to_vmem [thread:$0]  %s91, 1024, %s93, [#allocation10], 64, 64, 4
    $region33: #{tpu_custom_call.1} parent=1 // pred_fallthru
      _
    // Predicated region
    $region34: #{tpu_custom_call.1} parent=1 // pred_check
      _
    $region35: #{tpu_custom_call.1} parent=1 // pred_check_branch
      %100 = sbr.rel (0) target = $region37
    $region36: #{tpu_custom_call.1} parent=1 // pred_region
      _
    $region37: #{tpu_custom_call.1} parent=1 // pred_fallthru
      _
    // Predicated region
    $region38: #{tpu_custom_call.1} parent=1 // pred_check
      _
    $region39: #{tpu_custom_call.1} parent=1 // pred_check_branch
      %102 = sbr.rel (0) target = $region41
    $region40: #{tpu_custom_call.1} parent=1 // pred_region
      %104 = vsyncadd [#allocation13], 0
      %s105 = sshll.u32 %s9, 4
      %s106 = int_to_ptr.hbm [resolvable:$true] %s105
      %s107 = sshll.u32 [#allocation12], 4
      %s108 = int_to_ptr.vmem [resolvable:$true] %s107
      %113 = dma.hbm_to_vmem [thread:$0]  %s106, 2048, %s108, [#allocation13], 64, 64, 4
    $region41: #{tpu_custom_call.1} parent=1 // pred_fallthru
      _
    // Predicated region
    $region42: #{tpu_custom_call.1} parent=1 // pred_check
      _
    $region43: #{tpu_custom_call.1} parent=1 // pred_check_branch
      %115 = sbr.rel (0) target = $region45
    $region44: #{tpu_custom_call.1} parent=1 // pred_region
      _
    $region45: #{tpu_custom_call.1} parent=1 // pred_fallthru
      _
    // Predicated region
    $region46: #{tpu_custom_call.1} parent=1 // pred_check
      _
    $region47: #{tpu_custom_call.1} parent=1 // pred_check_branch
      %117 = sbr.rel (0) target = $region49
    $region48: #{tpu_custom_call.1} parent=1 // pred_region
      %119 = vsyncadd [#allocation13], 0
      %s120 = sshll.u32 %s11, 4
      %s121 = int_to_ptr.hbm [resolvable:$true] %s120
      %s122 = sshll.u32 [#allocation14], 4
      %s123 = int_to_ptr.vmem [resolvable:$true] %s122
      %128 = dma.hbm_to_vmem [thread:$0]  %s121, 1024, %s123, [#allocation13], 64, 64, 4
    $region49: #{tpu_custom_call.1} parent=1 // pred_fallthru
      _
    // Predicated region
    $region50: #{tpu_custom_call.1} parent=1 // pred_check
      _
    $region51: #{tpu_custom_call.1} parent=1 // pred_check_branch
      %130 = sbr.rel (0) target = $region53
    $region52: #{tpu_custom_call.1} parent=1 // pred_region
      _
    $region53: #{tpu_custom_call.1} parent=1 // pred_fallthru
      _
    // Predicated region
    $region54: #{tpu_custom_call.1} parent=1 // pred_check
      _
    $region55: #{tpu_custom_call.1} parent=1 // pred_check_branch
      %132 = sbr.rel (0) target = $region57
    $region56: #{tpu_custom_call.1} parent=1 // pred_region
      _
    $region57: #{tpu_custom_call.1} parent=1 // pred_fallthru
      _
    // Predicated region
    $region58: #{tpu_custom_call.1} parent=1 // pred_check
      _
    $region59: #{tpu_custom_call.1} parent=1 // pred_check_branch
      %134 = sbr.rel (0) target = $region61
    $region60: #{tpu_custom_call.1} parent=1 // pred_region
      _
    $region61: #{tpu_custom_call.1} parent=1 // pred_fallthru
      _
    // Predicated region
    $region62: #{tpu_custom_call.1} parent=1 // pred_check
      _
    $region63: #{tpu_custom_call.1} parent=1 // pred_check_branch
      %136 = sbr.rel (0) target = $region65
    $region64: #{tpu_custom_call.1} parent=1 // pred_region
      %138 = dma.done [#allocation4], 256
    $region65: #{tpu_custom_call.1} parent=1 // pred_fallthru
      _
    // Predicated region
    $region66: #{tpu_custom_call.1} parent=1 // pred_check
      _
    $region67: #{tpu_custom_call.1} parent=1 // pred_check_branch
      %140 = sbr.rel (0) target = $region69
    $region68: #{tpu_custom_call.1} parent=1 // pred_region
      %142 = dma.done [#allocation7], 4096
    $region69: #{tpu_custom_call.1} parent=1 // pred_fallthru
      _
    // Predicated region
    $region70: #{tpu_custom_call.1} parent=1 // pred_check
      _
    $region71: #{tpu_custom_call.1} parent=1 // pred_check_branch
      %144 = sbr.rel (0) target = $region73
    $region72: #{tpu_custom_call.1} parent=1 // pred_region
      %146 = dma.done [#allocation7], 64
    $region73: #{tpu_custom_call.1} parent=1 // pred_fallthru
      _
    // Predicated region
    $region74: #{tpu_custom_call.1} parent=1 // pred_check
      _
    $region75: #{tpu_custom_call.1} parent=1 // pred_check_branch
      %148 = sbr.rel (0) target = $region77
    $region76: #{tpu_custom_call.1} parent=1 // pred_region
      %150 = dma.done [#allocation10], 2048
    $region77: #{tpu_custom_call.1} parent=1 // pred_fallthru
      _
    // Predicated region
    $region78: #{tpu_custom_call.1} parent=1 // pred_check
      _
    $region79: #{tpu_custom_call.1} parent=1 // pred_check_branch
      %152 = sbr.rel (0) target = $region81
    $region80: #{tpu_custom_call.1} parent=1 // pred_region
      %154 = dma.done [#allocation10], 1024
    $region81: #{tpu_custom_call.1} parent=1 // pred_fallthru
      _
    // Predicated region
    $region82: #{tpu_custom_call.1} parent=1 // pred_check
      _
    $region83: #{tpu_custom_call.1} parent=1 // pred_check_branch
      %156 = sbr.rel (0) target = $region85
    $region84: #{tpu_custom_call.1} parent=1 // pred_region
      %158 = dma.done [#allocation13], 2048
    $region85: #{tpu_custom_call.1} parent=1 // pred_fallthru
      _
    // Predicated region
    $region86: #{tpu_custom_call.1} parent=1 // pred_check
      _
    $region87: #{tpu_custom_call.1} parent=1 // pred_check_branch
      %160 = sbr.rel (0) target = $region89
    $region88: #{tpu_custom_call.1} parent=1 // pred_region
      %162 = dma.done [#allocation13], 1024
    $region89: #{tpu_custom_call.1} parent=1 // pred_fallthru
      _
    %v163 = vld [vmem:[#allocation3] sm:$0xff]
    %v164 = vld [vmem:[#allocation3 + $0x8] sm:$0xff]
    %v165 = vpack.c.bf16 %v164, %v163
    %v166 = vld [vmem:[#allocation6] sm:$0xff]
    %v167 = vld [vmem:[#allocation6 + $0x8] sm:$0xff]
    %v168 = vld [vmem:[#allocation6 + $0x10] sm:$0xff]
    %v169 = vld [vmem:[#allocation6 + $0x18] sm:$0xff]
    %v170 = vld [vmem:[#allocation6 + $0x20] sm:$0xff]
    %v171 = vld [vmem:[#allocation6 + $0x28] sm:$0xff]
    %v172 = vld [vmem:[#allocation6 + $0x30] sm:$0xff]
    %v173 = vld [vmem:[#allocation6 + $0x38] sm:$0xff]
    %v174 = vld [vmem:[#allocation6 + $0x40] sm:$0xff]
    %v175 = vld [vmem:[#allocation6 + $0x48] sm:$0xff]
    %v176 = vld [vmem:[#allocation6 + $0x50] sm:$0xff]
    %v177 = vld [vmem:[#allocation6 + $0x58] sm:$0xff]
    %v178 = vld [vmem:[#allocation6 + $0x60] sm:$0xff]
    %v179 = vld [vmem:[#allocation6 + $0x68] sm:$0xff]
    %v180 = vld [vmem:[#allocation6 + $0x70] sm:$0xff]
    %v181 = vld [vmem:[#allocation6 + $0x78] sm:$0xff]
    %v182 = vld [vmem:[#allocation6 + $0x80] sm:$0xff]
    %v183 = vld [vmem:[#allocation6 + $0x88] sm:$0xff]
    %v184 = vld [vmem:[#allocation6 + $0x90] sm:$0xff]
    %v185 = vld [vmem:[#allocation6 + $0x98] sm:$0xff]
    %v186 = vld [vmem:[#allocation6 + $0xa0] sm:$0xff]
    %v187 = vld [vmem:[#allocation6 + $0xa8] sm:$0xff]
    %v188 = vld [vmem:[#allocation6 + $0xb0] sm:$0xff]
    %v189 = vld [vmem:[#allocation6 + $0xb8] sm:$0xff]
    %v190 = vld [vmem:[#allocation6 + $0xc0] sm:$0xff]
    %v191 = vld [vmem:[#allocation6 + $0xc8] sm:$0xff]
    %v192 = vld [vmem:[#allocation6 + $0xd0] sm:$0xff]
    %v193 = vld [vmem:[#allocation6 + $0xd8] sm:$0xff]
    %v194 = vld [vmem:[#allocation6 + $0xe0] sm:$0xff]
    %v195 = vld [vmem:[#allocation6 + $0xe8] sm:$0xff]
    %v196 = vld [vmem:[#allocation6 + $0xf0] sm:$0xff]
    %v197 = vld [vmem:[#allocation6 + $0xf8] sm:$0xff]
    %v198 = vld [vmem:[#allocation8] sm:$0xf]
    %v200 = vperm.slane %v198, 0
    %v201 = vperm.slane %v198, 1
    %v202 = vperm.slane %v198, 2
    %v203 = vperm.slane %v198, 3
    %v240 = vunpack.c.l.b16 %v166
    %v241 = vunpack.c.h.b16 %v166
    %v242 = vunpack.c.l.b16 %v167
    %v243 = vunpack.c.h.b16 %v167
    %v244 = vunpack.c.l.b16 %v168
    %v245 = vunpack.c.h.b16 %v168
    %v246 = vunpack.c.l.b16 %v169
    %v247 = vunpack.c.h.b16 %v169
    %v248 = vunpack.c.l.b16 %v170
    %v249 = vunpack.c.h.b16 %v170
    %v250 = vunpack.c.l.b16 %v171
    %v251 = vunpack.c.h.b16 %v171
    %v252 = vunpack.c.l.b16 %v172
    %v253 = vunpack.c.h.b16 %v172
    %v254 = vunpack.c.l.b16 %v173
    %v255 = vunpack.c.h.b16 %v173
    %v256 = vunpack.c.l.b16 %v174
    %v257 = vunpack.c.h.b16 %v174
    %v258 = vunpack.c.l.b16 %v175
    %v259 = vunpack.c.h.b16 %v175
    %v260 = vunpack.c.l.b16 %v176
    %v261 = vunpack.c.h.b16 %v176
    %v262 = vunpack.c.l.b16 %v177
    %v263 = vunpack.c.h.b16 %v177
    %v264 = vunpack.c.l.b16 %v178
    %v265 = vunpack.c.h.b16 %v178
    %v266 = vunpack.c.l.b16 %v179
    %v267 = vunpack.c.h.b16 %v179
    %v268 = vunpack.c.l.b16 %v180
    %v269 = vunpack.c.h.b16 %v180
    %v270 = vunpack.c.l.b16 %v181
    %v271 = vunpack.c.h.b16 %v181
    %v272 = vunpack.c.l.b16 %v182
    %v273 = vunpack.c.h.b16 %v182
    %v274 = vunpack.c.l.b16 %v183
    %v275 = vunpack.c.h.b16 %v183
    %v276 = vunpack.c.l.b16 %v184
    %v277 = vunpack.c.h.b16 %v184
    %v278 = vunpack.c.l.b16 %v185
    %v279 = vunpack.c.h.b16 %v185
    %v280 = vunpack.c.l.b16 %v186
    %v281 = vunpack.c.h.b16 %v186
    %v282 = vunpack.c.l.b16 %v187
    %v283 = vunpack.c.h.b16 %v187
    %v284 = vunpack.c.l.b16 %v188
    %v285 = vunpack.c.h.b16 %v188
    %v286 = vunpack.c.l.b16 %v189
    %v287 = vunpack.c.h.b16 %v189
    %v288 = vunpack.c.l.b16 %v190
    %v289 = vunpack.c.h.b16 %v190
    %v290 = vunpack.c.l.b16 %v191
    %v291 = vunpack.c.h.b16 %v191
    %v292 = vunpack.c.l.b16 %v192
    %v293 = vunpack.c.h.b16 %v192
    %v294 = vunpack.c.l.b16 %v193
    %v295 = vunpack.c.h.b16 %v193
    %v296 = vunpack.c.l.b16 %v194
    %v297 = vunpack.c.h.b16 %v194
    %v298 = vunpack.c.l.b16 %v195
    %v299 = vunpack.c.h.b16 %v195
    %v300 = vunpack.c.l.b16 %v196
    %v301 = vunpack.c.h.b16 %v196
    %v302 = vunpack.c.l.b16 %v197
    %v303 = vunpack.c.h.b16 %v197
    %v304 = vpack.c.b16 %v244, %v240
    %v305 = vpack.c.b16 %v245, %v241
    %v306 = vpack.c.b16 %v246, %v242
    %v307 = vpack.c.b16 %v247, %v243
    %v308 = vpack.c.b16 %v252, %v248
    %v309 = vpack.c.b16 %v253, %v249
    %v310 = vpack.c.b16 %v254, %v250
    %v311 = vpack.c.b16 %v255, %v251
    %v312 = vpack.c.b16 %v260, %v256
    %v313 = vpack.c.b16 %v261, %v257
    %v314 = vpack.c.b16 %v262, %v258
    %v315 = vpack.c.b16 %v263, %v259
    %v316 = vpack.c.b16 %v268, %v264
    %v317 = vpack.c.b16 %v269, %v265
    %v318 = vpack.c.b16 %v270, %v266
    %v319 = vpack.c.b16 %v271, %v267
    %v320 = vpack.c.b16 %v276, %v272
    %v321 = vpack.c.b16 %v277, %v273
    %v322 = vpack.c.b16 %v278, %v274
    %v323 = vpack.c.b16 %v279, %v275
    %v324 = vpack.c.b16 %v284, %v280
    %v325 = vpack.c.b16 %v285, %v281
    %v326 = vpack.c.b16 %v286, %v282
    %v327 = vpack.c.b16 %v287, %v283
    %v328 = vpack.c.b16 %v292, %v288
    %v329 = vpack.c.b16 %v293, %v289
    %v330 = vpack.c.b16 %v294, %v290
    %v331 = vpack.c.b16 %v295, %v291
    %v332 = vpack.c.b16 %v300, %v296
    %v333 = vpack.c.b16 %v301, %v297
    %v334 = vpack.c.b16 %v302, %v298
    %v335 = vpack.c.b16 %v303, %v299
    %368 = vmatpush.bf16.msra.mxu0 %v332
    %369 = vmatpush.bf16.msra.mxu0 %v328
    %370 = vmatpush.bf16.msra.mxu0 %v324
    %371 = vmatpush.bf16.msra.mxu0 %v320
    %372 = vmatpush.bf16.msra.mxu0 %v316
    %373 = vmatpush.bf16.msra.mxu0 %v312
    %374 = vmatpush.bf16.msra.mxu0 %v308
    %375 = vmatpush.bf16.msra.mxu0 %v304
    %376 = vmatmul.bf16.gmra.mxu0 %v165
    %v377 = vpop.f32.mrf.mxu0
    %v378 = vadd.f32 %v200, %v377
    %v379 = vpop.f32.mrf.mxu0
    %v380 = vadd.f32 %v200, %v379
    %381 = vdwg.mxu0
    %382 = vmatpush.bf16.msra.mxu0 %v333
    %383 = vmatpush.bf16.msra.mxu0 %v329
    %384 = vmatpush.bf16.msra.mxu0 %v325
    %385 = vmatpush.bf16.msra.mxu0 %v321
    %386 = vmatpush.bf16.msra.mxu0 %v317
    %387 = vmatpush.bf16.msra.mxu0 %v313
    %388 = vmatpush.bf16.msra.mxu0 %v309
    %389 = vmatpush.bf16.msra.mxu0 %v305
    %390 = vmatmul.bf16.gmra.mxu0 %v165
    %v391 = vpop.f32.mrf.mxu0
    %v392 = vadd.f32 %v201, %v391
    %v393 = vpop.f32.mrf.mxu0
    %v394 = vadd.f32 %v201, %v393
    %395 = vdwg.mxu0
    %396 = vmatpush.bf16.msra.mxu0 %v334
    %397 = vmatpush.bf16.msra.mxu0 %v330
    %398 = vmatpush.bf16.msra.mxu0 %v326
    %399 = vmatpush.bf16.msra.mxu0 %v322
    %400 = vmatpush.bf16.msra.mxu0 %v318
    %401 = vmatpush.bf16.msra.mxu0 %v314
    %402 = vmatpush.bf16.msra.mxu0 %v310
    %403 = vmatpush.bf16.msra.mxu0 %v306
    %404 = vmatmul.bf16.gmra.mxu0 %v165
    %v405 = vpop.f32.mrf.mxu0
    %v406 = vadd.f32 %v202, %v405
    %v407 = vpop.f32.mrf.mxu0
    %v408 = vadd.f32 %v202, %v407
    %409 = vdwg.mxu0
    %410 = vmatpush.bf16.msra.mxu0 %v335
    %411 = vmatpush.bf16.msra.mxu0 %v331
    %412 = vmatpush.bf16.msra.mxu0 %v327
    %413 = vmatpush.bf16.msra.mxu0 %v323
    %414 = vmatpush.bf16.msra.mxu0 %v319
    %415 = vmatpush.bf16.msra.mxu0 %v315
    %416 = vmatpush.bf16.msra.mxu0 %v311
    %417 = vmatpush.bf16.msra.mxu0 %v307
    %418 = vmatmul.bf16.gmra.mxu0 %v165
    %v419 = vpop.f32.mrf.mxu0
    %v420 = vadd.f32 %v203, %v419
    %v421 = vpop.f32.mrf.mxu0
    %v422 = vadd.f32 %v203, %v421
    %423 = vdwg.mxu0
    %v424 = vadd.f32 %v378, %v392
    %425 = vadd.xlane.f32.xlu0 %v424
    %v426 = vpop.xlane.xlu0 %425
    %v427 = vadd.f32 %v380, %v394
    %428 = vadd.xlane.f32.xlu0 %v427
    %v429 = vpop.xlane.xlu0 %428
    %v430 = vrcp.pop 256.0
    %v431 = vmul.f32 256.0, %v430
    %v432 = vsub.f32 1.0, %v431
    %v433 = vmul.f32 %v430, %v432
    %v434 = vadd.f32 %v430, %v433
    %vm435 = vweird.f32 %v430
    %v436 = vsel %vm435, %v430, %v434
    %v437 = vmul.f32 %v426, %v436
    %v438 = vmul.f32 %v429, %v436
    %v439 = vsub.f32 %v378, %v437
    %v440 = vsub.f32 %v392, %v437
    %v441 = vsub.f32 %v380, %v438
    %v442 = vsub.f32 %v394, %v438
    %v443 = vmul.f32 %v439, %v439
    %v444 = vmul.f32 %v440, %v440
    %v445 = vmul.f32 %v441, %v441
    %v446 = vmul.f32 %v442, %v442
    %v447 = vadd.f32 %v443, %v444
    %448 = vadd.xlane.f32.xlu0 %v447
    %v449 = vpop.xlane.xlu0 %448
    %v450 = vadd.f32 %v445, %v446
    %451 = vadd.xlane.f32.xlu0 %v450
    %v452 = vpop.xlane.xlu0 %451
    %v453 = vmul.f32 %v449, %v436
    %v454 = vmul.f32 %v452, %v436
    %v455 = vadd.f32 %v453, 1e-05
    %v456 = vadd.f32 %v454, 1e-05
    %v457 = vrsqrt.pop %v455
    %v458 = vmul.f32 %v457, %v455
    %v459 = vmul.f32 %v458, %v457
    %v460 = vmul.f32 0.5, %v459
    %v461 = vsub.f32 1.5, %v460
    %v462 = vmul.f32 %v457, %v461
    %vm463 = vweird.f32 %v455
    %vm464 = vweird.f32 %v457
    %vm465 = vmor %vm463, %vm464
    %v466 = vsel %vm465, %v457, %v462
    %v467 = vrsqrt.pop %v456
    %v468 = vmul.f32 %v467, %v456
    %v469 = vmul.f32 %v468, %v467
    %v470 = vmul.f32 0.5, %v469
    %v471 = vsub.f32 1.5, %v470
    %v472 = vmul.f32 %v467, %v471
    %vm473 = vweird.f32 %v456
    %vm474 = vweird.f32 %v467
    %vm475 = vmor %vm473, %vm474
    %v476 = vsel %vm475, %v467, %v472
    %v477 = vmul.f32 %v439, %v466
    %v478 = vmul.f32 %v440, %v466
    %v479 = vmul.f32 %v441, %v476
    %v480 = vmul.f32 %v442, %v476
    %v481 = vld [vmem:[%s3] sm:$0x3]
    %v483 = vperm.slane %v481, 0
    %v484 = vperm.slane %v481, 1
    %v487 = vmul.f32 %v477, %v483
    %v488 = vmul.f32 %v478, %v484
    %v489 = vmul.f32 %v479, %v483
    %v490 = vmul.f32 %v480, %v484
    %v491 = vld [vmem:[%s4] sm:$0x3]
    %v493 = vperm.slane %v491, 0
    %v494 = vperm.slane %v491, 1
    %v497 = vadd.f32 %v487, %v493
    %v498 = vadd.f32 %v488, %v494
    %v499 = vadd.f32 %v489, %v493
    %v500 = vadd.f32 %v490, %v494
    %v501 = vmax.f32 %v497, 0.0
    %v502 = vmax.f32 %v498, 0.0
    %v503 = vmax.f32 %v499, 0.0
    %v504 = vmax.f32 %v500, 0.0
    %v505 = vpack.c.bf16 %v503, %v501
    %v506 = vpack.c.bf16 %v504, %v502
    %v507 = vld [vmem:[#allocation9] sm:$0xf]
    %v508 = vld [vmem:[#allocation9 + $0x4] sm:$0xf]
    %v509 = vld [vmem:[#allocation9 + $0x8] sm:$0xf]
    %v510 = vld [vmem:[#allocation9 + $0xc] sm:$0xf]
    %v511 = vld [vmem:[#allocation9 + $0x10] sm:$0xf]
    %v512 = vld [vmem:[#allocation9 + $0x14] sm:$0xf]
    %v513 = vld [vmem:[#allocation9 + $0x18] sm:$0xf]
    %v514 = vld [vmem:[#allocation9 + $0x1c] sm:$0xf]
    %v515 = vld [vmem:[#allocation9 + $0x20] sm:$0xf]
    %v516 = vld [vmem:[#allocation9 + $0x24] sm:$0xf]
    %v517 = vld [vmem:[#allocation9 + $0x28] sm:$0xf]
    %v518 = vld [vmem:[#allocation9 + $0x2c] sm:$0xf]
    %v519 = vld [vmem:[#allocation9 + $0x30] sm:$0xf]
    %v520 = vld [vmem:[#allocation9 + $0x34] sm:$0xf]
    %v521 = vld [vmem:[#allocation9 + $0x38] sm:$0xf]
    %v522 = vld [vmem:[#allocation9 + $0x3c] sm:$0xf]
    %v523 = vld [vmem:[#allocation9 + $0x40] sm:$0xf]
    %v524 = vld [vmem:[#allocation9 + $0x44] sm:$0xf]
    %v525 = vld [vmem:[#allocation9 + $0x48] sm:$0xf]
    %v526 = vld [vmem:[#allocation9 + $0x4c] sm:$0xf]
    %v527 = vld [vmem:[#allocation9 + $0x50] sm:$0xf]
    %v528 = vld [vmem:[#allocation9 + $0x54] sm:$0xf]
    %v529 = vld [vmem:[#allocation9 + $0x58] sm:$0xf]
    %v530 = vld [vmem:[#allocation9 + $0x5c] sm:$0xf]
    %v531 = vld [vmem:[#allocation9 + $0x60] sm:$0xf]
    %v532 = vld [vmem:[#allocation9 + $0x64] sm:$0xf]
    %v533 = vld [vmem:[#allocation9 + $0x68] sm:$0xf]
    %v534 = vld [vmem:[#allocation9 + $0x6c] sm:$0xf]
    %v535 = vld [vmem:[#allocation9 + $0x70] sm:$0xf]
    %v536 = vld [vmem:[#allocation9 + $0x74] sm:$0xf]
    %v537 = vld [vmem:[#allocation9 + $0x78] sm:$0xf]
    %v538 = vld [vmem:[#allocation9 + $0x7c] sm:$0xf]
    %v539 = vld [vmem:[%s6] sm:$0x1]
    %v541 = vperm.slane %v539, 0
    %v575 = vunpack.c.l.b16 %v507
    %v576 = vunpack.c.l.b16 %v508
    %v577 = vunpack.c.l.b16 %v509
    %v578 = vunpack.c.l.b16 %v510
    %v579 = vunpack.c.l.b16 %v511
    %v580 = vunpack.c.l.b16 %v512
    %v581 = vunpack.c.l.b16 %v513
    %v582 = vunpack.c.l.b16 %v514
    %v583 = vunpack.c.l.b16 %v515
    %v584 = vunpack.c.l.b16 %v516
    %v585 = vunpack.c.l.b16 %v517
    %v586 = vunpack.c.l.b16 %v518
    %v587 = vunpack.c.l.b16 %v519
    %v588 = vunpack.c.l.b16 %v520
    %v589 = vunpack.c.l.b16 %v521
    %v590 = vunpack.c.l.b16 %v522
    %v591 = vunpack.c.l.b16 %v523
    %v592 = vunpack.c.l.b16 %v524
    %v593 = vunpack.c.l.b16 %v525
    %v594 = vunpack.c.l.b16 %v526
    %v595 = vunpack.c.l.b16 %v527
    %v596 = vunpack.c.l.b16 %v528
    %v597 = vunpack.c.l.b16 %v529
    %v598 = vunpack.c.l.b16 %v530
    %v599 = vunpack.c.l.b16 %v531
    %v600 = vunpack.c.l.b16 %v532
    %v601 = vunpack.c.l.b16 %v533
    %v602 = vunpack.c.l.b16 %v534
    %v603 = vunpack.c.l.b16 %v535
    %v604 = vunpack.c.l.b16 %v536
    %v605 = vunpack.c.l.b16 %v537
    %v606 = vunpack.c.l.b16 %v538
    %v607 = vpack.c.b16 %v576, %v575
    %v608 = vpack.c.b16 %v578, %v577
    %v609 = vpack.c.b16 %v580, %v579
    %v610 = vpack.c.b16 %v582, %v581
    %v611 = vpack.c.b16 %v584, %v583
    %v612 = vpack.c.b16 %v586, %v585
    %v613 = vpack.c.b16 %v588, %v587
    %v614 = vpack.c.b16 %v590, %v589
    %v615 = vpack.c.b16 %v592, %v591
    %v616 = vpack.c.b16 %v594, %v593
    %v617 = vpack.c.b16 %v596, %v595
    %v618 = vpack.c.b16 %v598, %v597
    %v619 = vpack.c.b16 %v600, %v599
    %v620 = vpack.c.b16 %v602, %v601
    %v621 = vpack.c.b16 %v604, %v603
    %v622 = vpack.c.b16 %v606, %v605
    %639 = vmatpush.bf16.msra.mxu0 %v614
    %640 = vmatpush.bf16.msra.mxu0 %v613
    %641 = vmatpush.bf16.msra.mxu0 %v612
    %642 = vmatpush.bf16.msra.mxu0 %v611
    %643 = vmatpush.bf16.msra.mxu0 %v610
    %644 = vmatpush.bf16.msra.mxu0 %v609
    %645 = vmatpush.bf16.msra.mxu0 %v608
    %646 = vmatpush.bf16.msra.mxu0 %v607
    %647 = vmatmul.bf16.gmra.mxu0 %v505
    %v648 = vpop.f32.mrf.mxu0
    %v649 = vadd.f32 %v541, %v648
    %v650 = vpop.f32.mrf.mxu0
    %v651 = vadd.f32 %v541, %v650
    %652 = vdwg.mxu0
    %653 = vmatpush.bf16.msra.mxu0 %v622
    %654 = vmatpush.bf16.msra.mxu0 %v621
    %655 = vmatpush.bf16.msra.mxu0 %v620
    %656 = vmatpush.bf16.msra.mxu0 %v619
    %657 = vmatpush.bf16.msra.mxu0 %v618
    %658 = vmatpush.bf16.msra.mxu0 %v617
    %659 = vmatpush.bf16.msra.mxu0 %v616
    %660 = vmatpush.bf16.msra.mxu0 %v615
    %661 = vmatmul.bf16.gmra.mxu0 %v506
    %v662 = vpop.f32.mrf.mxu0
    %v663 = vadd.f32 %v649, %v662
    %v664 = vpop.f32.mrf.mxu0
    %v665 = vadd.f32 %v651, %v664
    %666 = vdwg.mxu0
    %v667 = vpack.c.bf16 %v665, %v663
    %v668 = vld [vmem:[#allocation11] sm:$0xf]
    %v669 = vld [vmem:[#allocation11 + $0x4] sm:$0xf]
    %v670 = vld [vmem:[#allocation11 + $0x8] sm:$0xf]
    %v671 = vld [vmem:[#allocation11 + $0xc] sm:$0xf]
    %v672 = vld [vmem:[#allocation11 + $0x10] sm:$0xf]
    %v673 = vld [vmem:[#allocation11 + $0x14] sm:$0xf]
    %v674 = vld [vmem:[#allocation11 + $0x18] sm:$0xf]
    %v675 = vld [vmem:[#allocation11 + $0x1c] sm:$0xf]
    %v676 = vld [vmem:[#allocation11 + $0x20] sm:$0xf]
    %v677 = vld [vmem:[#allocation11 + $0x24] sm:$0xf]
    %v678 = vld [vmem:[#allocation11 + $0x28] sm:$0xf]
    %v679 = vld [vmem:[#allocation11 + $0x2c] sm:$0xf]
    %v680 = vld [vmem:[#allocation11 + $0x30] sm:$0xf]
    %v681 = vld [vmem:[#allocation11 + $0x34] sm:$0xf]
    %v682 = vld [vmem:[#allocation11 + $0x38] sm:$0xf]
    %v683 = vld [vmem:[#allocation11 + $0x3c] sm:$0xf]
    %v684 = vld [vmem:[%s8] sm:$0x1]
    %v686 = vperm.slane %v684, 0
    %v704 = vunpack.c.l.b16 %v668
    %v705 = vunpack.c.l.b16 %v669
    %v706 = vunpack.c.l.b16 %v670
    %v707 = vunpack.c.l.b16 %v671
    %v708 = vunpack.c.l.b16 %v672
    %v709 = vunpack.c.l.b16 %v673
    %v710 = vunpack.c.l.b16 %v674
    %v711 = vunpack.c.l.b16 %v675
    %v712 = vunpack.c.l.b16 %v676
    %v713 = vunpack.c.l.b16 %v677
    %v714 = vunpack.c.l.b16 %v678
    %v715 = vunpack.c.l.b16 %v679
    %v716 = vunpack.c.l.b16 %v680
    %v717 = vunpack.c.l.b16 %v681
    %v718 = vunpack.c.l.b16 %v682
    %v719 = vunpack.c.l.b16 %v683
    %v720 = vpack.c.b16 %v705, %v704
    %v721 = vpack.c.b16 %v707, %v706
    %v722 = vpack.c.b16 %v709, %v708
    %v723 = vpack.c.b16 %v711, %v710
    %v724 = vpack.c.b16 %v713, %v712
    %v725 = vpack.c.b16 %v715, %v714
    %v726 = vpack.c.b16 %v717, %v716
    %v727 = vpack.c.b16 %v719, %v718
    %736 = vmatpush.bf16.msra.mxu0 %v727
    %737 = vmatpush.bf16.msra.mxu0 %v726
    %738 = vmatpush.bf16.msra.mxu0 %v725
    %739 = vmatpush.bf16.msra.mxu0 %v724
    %740 = vmatpush.bf16.msra.mxu0 %v723
    %741 = vmatpush.bf16.msra.mxu0 %v722
    %742 = vmatpush.bf16.msra.mxu0 %v721
    %743 = vmatpush.bf16.msra.mxu0 %v720
    %744 = vmatmul.bf16.gmra.mxu0 %v667
    %v745 = vpop.f32.mrf.mxu0
    %v746 = vadd.f32 %v686, %v745
    %v747 = vpop.f32.mrf.mxu0
    %v748 = vadd.f32 %v686, %v747
    %749 = vdwg.mxu0
    %750 = vst [vmem:[#allocation15] sm:$0xff] %v746
    %751 = vst [vmem:[#allocation15 + $0x8] sm:$0xff] %v748
    %v752 = vmax.f32 %v406, 0.0
    %v753 = vmax.f32 %v420, 0.0
    %v754 = vmax.f32 %v408, 0.0
    %v755 = vmax.f32 %v422, 0.0
    %v756 = vpack.c.bf16 %v754, %v752
    %v757 = vpack.c.bf16 %v755, %v753
    %v758 = vld [vmem:[#allocation12] sm:$0xf]
    %v759 = vld [vmem:[#allocation12 + $0x4] sm:$0xf]
    %v760 = vld [vmem:[#allocation12 + $0x8] sm:$0xf]
    %v761 = vld [vmem:[#allocation12 + $0xc] sm:$0xf]
    %v762 = vld [vmem:[#allocation12 + $0x10] sm:$0xf]
    %v763 = vld [vmem:[#allocation12 + $0x14] sm:$0xf]
    %v764 = vld [vmem:[#allocation12 + $0x18] sm:$0xf]
    %v765 = vld [vmem:[#allocation12 + $0x1c] sm:$0xf]
    %v766 = vld [vmem:[#allocation12 + $0x20] sm:$0xf]
    %v767 = vld [vmem:[#allocation12 + $0x24] sm:$0xf]
    %v768 = vld [vmem:[#allocation12 + $0x28] sm:$0xf]
    %v769 = vld [vmem:[#allocation12 + $0x2c] sm:$0xf]
    %v770 = vld [vmem:[#allocation12 + $0x30] sm:$0xf]
    %v771 = vld [vmem:[#allocation12 + $0x34] sm:$0xf]
    %v772 = vld [vmem:[#allocation12 + $0x38] sm:$0xf]
    %v773 = vld [vmem:[#allocation12 + $0x3c] sm:$0xf]
    %v774 = vld [vmem:[#allocation12 + $0x40] sm:$0xf]
    %v775 = vld [vmem:[#allocation12 + $0x44] sm:$0xf]
    %v776 = vld [vmem:[#allocation12 + $0x48] sm:$0xf]
    %v777 = vld [vmem:[#allocation12 + $0x4c] sm:$0xf]
    %v778 = vld [vmem:[#allocation12 + $0x50] sm:$0xf]
    %v779 = vld [vmem:[#allocation12 + $0x54] sm:$0xf]
    %v780 = vld [vmem:[#allocation12 + $0x58] sm:$0xf]
    %v781 = vld [vmem:[#allocation12 + $0x5c] sm:$0xf]
    %v782 = vld [vmem:[#allocation12 + $0x60] sm:$0xf]
    %v783 = vld [vmem:[#allocation12 + $0x64] sm:$0xf]
    %v784 = vld [vmem:[#allocation12 + $0x68] sm:$0xf]
    %v785 = vld [vmem:[#allocation12 + $0x6c] sm:$0xf]
    %v786 = vld [vmem:[#allocation12 + $0x70] sm:$0xf]
    %v787 = vld [vmem:[#allocation12 + $0x74] sm:$0xf]
    %v788 = vld [vmem:[#allocation12 + $0x78] sm:$0xf]
    %v789 = vld [vmem:[#allocation12 + $0x7c] sm:$0xf]
    %v790 = vld [vmem:[%s10] sm:$0x1]
    %v792 = vperm.slane %v790, 0
    %v826 = vunpack.c.l.b16 %v758
    %v827 = vunpack.c.l.b16 %v759
    %v828 = vunpack.c.l.b16 %v760
    %v829 = vunpack.c.l.b16 %v761
    %v830 = vunpack.c.l.b16 %v762
    %v831 = vunpack.c.l.b16 %v763
    %v832 = vunpack.c.l.b16 %v764
    %v833 = vunpack.c.l.b16 %v765
    %v834 = vunpack.c.l.b16 %v766
    %v835 = vunpack.c.l.b16 %v767
    %v836 = vunpack.c.l.b16 %v768
    %v837 = vunpack.c.l.b16 %v769
    %v838 = vunpack.c.l.b16 %v770
    %v839 = vunpack.c.l.b16 %v771
    %v840 = vunpack.c.l.b16 %v772
    %v841 = vunpack.c.l.b16 %v773
    %v842 = vunpack.c.l.b16 %v774
    %v843 = vunpack.c.l.b16 %v775
    %v844 = vunpack.c.l.b16 %v776
    %v845 = vunpack.c.l.b16 %v777
    %v846 = vunpack.c.l.b16 %v778
    %v847 = vunpack.c.l.b16 %v779
    %v848 = vunpack.c.l.b16 %v780
    %v849 = vunpack.c.l.b16 %v781
    %v850 = vunpack.c.l.b16 %v782
    %v851 = vunpack.c.l.b16 %v783
    %v852 = vunpack.c.l.b16 %v784
    %v853 = vunpack.c.l.b16 %v785
    %v854 = vunpack.c.l.b16 %v786
    %v855 = vunpack.c.l.b16 %v787
    %v856 = vunpack.c.l.b16 %v788
    %v857 = vunpack.c.l.b16 %v789
    %v858 = vpack.c.b16 %v827, %v826
    %v859 = vpack.c.b16 %v829, %v828
    %v860 = vpack.c.b16 %v831, %v830
    %v861 = vpack.c.b16 %v833, %v832
    %v862 = vpack.c.b16 %v835, %v834
    %v863 = vpack.c.b16 %v837, %v836
    %v864 = vpack.c.b16 %v839, %v838
    %v865 = vpack.c.b16 %v841, %v840
    %v866 = vpack.c.b16 %v843, %v842
    %v867 = vpack.c.b16 %v845, %v844
    %v868 = vpack.c.b16 %v847, %v846
    %v869 = vpack.c.b16 %v849, %v848
    %v870 = vpack.c.b16 %v851, %v850
    %v871 = vpack.c.b16 %v853, %v852
    %v872 = vpack.c.b16 %v855, %v854
    %v873 = vpack.c.b16 %v857, %v856
    %890 = vmatpush.bf16.msra.mxu0 %v865
    %891 = vmatpush.bf16.msra.mxu0 %v864
    %892 = vmatpush.bf16.msra.mxu0 %v863
    %893 = vmatpush.bf16.msra.mxu0 %v862
    %894 = vmatpush.bf16.msra.mxu0 %v861
    %895 = vmatpush.bf16.msra.mxu0 %v860
    %896 = vmatpush.bf16.msra.mxu0 %v859
    %897 = vmatpush.bf16.msra.mxu0 %v858
    %898 = vmatmul.bf16.gmra.mxu0 %v756
    %v899 = vpop.f32.mrf.mxu0
    %v900 = vadd.f32 %v792, %v899
    %v901 = vpop.f32.mrf.mxu0
    %v902 = vadd.f32 %v792, %v901
    %903 = vdwg.mxu0
    %904 = vmatpush.bf16.msra.mxu0 %v873
    %905 = vmatpush.bf16.msra.mxu0 %v872
    %906 = vmatpush.bf16.msra.mxu0 %v871
    %907 = vmatpush.bf16.msra.mxu0 %v870
    %908 = vmatpush.bf16.msra.mxu0 %v869
    %909 = vmatpush.bf16.msra.mxu0 %v868
    %910 = vmatpush.bf16.msra.mxu0 %v867
    %911 = vmatpush.bf16.msra.mxu0 %v866
    %912 = vmatmul.bf16.gmra.mxu0 %v757
    %v913 = vpop.f32.mrf.mxu0
    %v914 = vadd.f32 %v900, %v913
    %v915 = vpop.f32.mrf.mxu0
    %v916 = vadd.f32 %v902, %v915
    %917 = vdwg.mxu0
    %v918 = vpack.c.bf16 %v916, %v914
    %v919 = vld [vmem:[#allocation14] sm:$0xf]
    %v920 = vld [vmem:[#allocation14 + $0x4] sm:$0xf]
    %v921 = vld [vmem:[#allocation14 + $0x8] sm:$0xf]
    %v922 = vld [vmem:[#allocation14 + $0xc] sm:$0xf]
    %v923 = vld [vmem:[#allocation14 + $0x10] sm:$0xf]
    %v924 = vld [vmem:[#allocation14 + $0x14] sm:$0xf]
    %v925 = vld [vmem:[#allocation14 + $0x18] sm:$0xf]
    %v926 = vld [vmem:[#allocation14 + $0x1c] sm:$0xf]
    %v927 = vld [vmem:[#allocation14 + $0x20] sm:$0xf]
    %v928 = vld [vmem:[#allocation14 + $0x24] sm:$0xf]
    %v929 = vld [vmem:[#allocation14 + $0x28] sm:$0xf]
    %v930 = vld [vmem:[#allocation14 + $0x2c] sm:$0xf]
    %v931 = vld [vmem:[#allocation14 + $0x30] sm:$0xf]
    %v932 = vld [vmem:[#allocation14 + $0x34] sm:$0xf]
    %v933 = vld [vmem:[#allocation14 + $0x38] sm:$0xf]
    %v934 = vld [vmem:[#allocation14 + $0x3c] sm:$0xf]
    %v935 = vld [vmem:[%s12] sm:$0x1]
    %v937 = vperm.slane %v935, 0
    %v955 = vunpack.c.l.b16 %v919
    %v956 = vunpack.c.l.b16 %v920
    %v957 = vunpack.c.l.b16 %v921
    %v958 = vunpack.c.l.b16 %v922
    %v959 = vunpack.c.l.b16 %v923
    %v960 = vunpack.c.l.b16 %v924
    %v961 = vunpack.c.l.b16 %v925
    %v962 = vunpack.c.l.b16 %v926
    %v963 = vunpack.c.l.b16 %v927
    %v964 = vunpack.c.l.b16 %v928
    %v965 = vunpack.c.l.b16 %v929
    %v966 = vunpack.c.l.b16 %v930
    %v967 = vunpack.c.l.b16 %v931
    %v968 = vunpack.c.l.b16 %v932
    %v969 = vunpack.c.l.b16 %v933
    %v970 = vunpack.c.l.b16 %v934
    %v971 = vpack.c.b16 %v956, %v955
    %v972 = vpack.c.b16 %v958, %v957
    %v973 = vpack.c.b16 %v960, %v959
    %v974 = vpack.c.b16 %v962, %v961
    %v975 = vpack.c.b16 %v964, %v963
    %v976 = vpack.c.b16 %v966, %v965
    %v977 = vpack.c.b16 %v968, %v967
    %v978 = vpack.c.b16 %v970, %v969
    %987 = vmatpush.bf16.msra.mxu0 %v978
    %988 = vmatpush.bf16.msra.mxu0 %v977
    %989 = vmatpush.bf16.msra.mxu0 %v976
    %990 = vmatpush.bf16.msra.mxu0 %v975
    %991 = vmatpush.bf16.msra.mxu0 %v974
    %992 = vmatpush.bf16.msra.mxu0 %v973
    %993 = vmatpush.bf16.msra.mxu0 %v972
    %994 = vmatpush.bf16.msra.mxu0 %v971
    %995 = vmatmul.bf16.gmra.mxu0 %v918
    %v996 = vpop.f32.mrf.mxu0
    %v997 = vadd.f32 %v937, %v996
    %v998 = vpop.f32.mrf.mxu0
    %v999 = vadd.f32 %v937, %v998
    %1000 = vdwg.mxu0
    %v1001 = vld [vmem:[%s13] sm:$0x1]
    %v1003 = vperm.slane %v1001, 0
    %v1005 = vmul.f32 %v997, %v1003
    %v1006 = vmul.f32 %v999, %v1003
    %1007 = vadd.xlane.f32.xlu0 %v1005
    %v1008 = vpop.xlane.xlu0 %1007
    %1009 = vadd.xlane.f32.xlu0 %v1006
    %v1010 = vpop.xlane.xlu0 %1009
    %v1011 = vld [vmem:[#allocation2] sm:$0x1]
    %v1013 = vperm.slane %v1011, 0
    %1014 = vset.pattern.permute.xlu0 0
    %1015 = vperm.xlu0 %1014, %v1013
    %v1016 = vpop.permute.xlu0 %1015
    %v1018 = vadd.f32 %v1008, %v1016
    %v1019 = vadd.f32 %v1010, %v1016
    %v1022 = vlaneseq
    %v1023 = vand.u32 %v1022, 127
    %v1024 = vperm.slane %v1018, %v1023
    %v1025 = vperm.slane %v1019, %v1023
    %vm1026 = vcmask 1041409
    %v1027 = vsel %vm1026, %v1025, %v1024
    %vm1029 = vcmask 58368
    %v1030 = vsel %vm1029, %v1027, -inf
    %1031 = vmax.xlane.f32.xlu0 %v1030
    %v1032 = vpop.xlane.xlu0 %1031
    %v1034 = vperm.slane %v1032, 0
    %v1035 = vperm.slane %v1032, 1
    %v1038 = vsub.f32 %v1018, %v1034
    %v1039 = vsub.f32 %v1019, %v1035
    %v1040 = vmul.f32 %v1038, 1.442695
    %v1041 = vpow.pop %v1040
    %v1042 = vmul.f32 %v1039, 1.442695
    %v1043 = vpow.pop %v1042
    %1046 = vset.pattern.permute.xlu0 0
    %1047 = vperm.xlu0 %1046, %v1041
    %v1048 = vpop.permute.xlu0 %1047
    %1049 = vset.pattern.permute.xlu0 0
    %1050 = vperm.xlu0 %1049, %v1043
    %v1051 = vpop.permute.xlu0 %1050
    %v1052 = vperm.slane %v1048, %v1023
    %v1053 = vperm.slane %v1051, %v1023
    %v1054 = vsel %vm1026, %v1053, %v1052
    %v1056 = vsel %vm1029, %v1054, 0.0
    %1057 = vadd.xlane.f32.xlu0 %v1056
    %v1058 = vpop.xlane.xlu0 %1057
    %v1060 = vperm.slane %v1058, 0
    %v1061 = vperm.slane %v1058, 1
    %v1064 = vrcp.pop %v1060
    %v1065 = vmul.f32 %v1060, %v1064
    %v1066 = vsub.f32 1.0, %v1065
    %v1067 = vmul.f32 %v1064, %v1066
    %v1068 = vadd.f32 %v1064, %v1067
    %vm1069 = vweird.f32 %v1060
    %vm1070 = vweird.f32 %v1064
    %vm1071 = vmor %vm1069, %vm1070
    %v1072 = vsel %vm1071, %v1064, %v1068
    %v1073 = vand.u32 2147483647, %v1060
    %vm1074 = vcmp.eq.f32.partialorder %v1073, 8.507059e+37
    %v1075 = vand.u32 %v1060, 2147483648
    %v1076 = vor.u32 1.1754944e-38, %v1075
    %v1077 = vsel %vm1074, %v1076, %v1072
    %v1078 = vmul.f32 %v1041, %v1077
    %v1079 = vrcp.pop %v1061
    %v1080 = vmul.f32 %v1061, %v1079
    %v1081 = vsub.f32 1.0, %v1080
    %v1082 = vmul.f32 %v1079, %v1081
    %v1083 = vadd.f32 %v1079, %v1082
    %vm1084 = vweird.f32 %v1061
    %vm1085 = vweird.f32 %v1079
    %vm1086 = vmor %vm1084, %vm1085
    %v1087 = vsel %vm1086, %v1079, %v1083
    %v1088 = vand.u32 2147483647, %v1061
    %vm1089 = vcmp.eq.f32.partialorder %v1088, 8.507059e+37
    %v1090 = vand.u32 %v1061, 2147483648
    %v1091 = vor.u32 1.1754944e-38, %v1090
    %v1092 = vsel %vm1089, %v1091, %v1087
    %v1093 = vmul.f32 %v1043, %v1092
    %1096 = vset.pattern.permute.xlu0 0
    %1097 = vperm.xlu0 %1096, %v1078
    %v1098 = vpop.permute.xlu0 %1097
    %1099 = vset.pattern.permute.xlu0 0
    %1100 = vperm.xlu0 %1099, %v1093
    %v1101 = vpop.permute.xlu0 %1100
    %v1102 = vperm.slane %v1098, %v1023
    %v1103 = vperm.slane %v1101, %v1023
    %v1104 = vsel %vm1026, %v1103, %v1102
    %1106 = vst.msk [vmem:[#allocation16] sm:$0x3] %vm1029, %v1104
    // Predicated region
    $region90: #{tpu_custom_call.1} parent=1 // pred_check
      _
    $region91: #{tpu_custom_call.1} parent=1 // pred_check_branch
      %1108 = sbr.rel (0) target = $region93
    $region92: #{tpu_custom_call.1} parent=1 // pred_region
      %1110 = vsyncadd [#allocation5], 0
      %s1111 = sshll.u32 [#allocation15], 4
      %s1112 = int_to_ptr.vmem [resolvable:$true] %s1111
      %s1113 = sshll.u32 %s15, 4
      %s1114 = int_to_ptr.hbm [resolvable:$true] %s1113
      %1119 = dma.vmem_to_hbm [thread:$0]  %s1112, 256, %s1114, [#allocation5], 128, 128, 8
    $region93: #{tpu_custom_call.1} parent=1 // pred_fallthru
      _
    // Predicated region
    $region94: #{tpu_custom_call.1} parent=1 // pred_check
      _
    $region95: #{tpu_custom_call.1} parent=1 // pred_check_branch
      %1121 = sbr.rel (0) target = $region97
    $region96: #{tpu_custom_call.1} parent=1 // pred_region
      %1123 = vsyncadd [#allocation17], 0
      %s1125 = sshll.u32 [#allocation16], 4
      %s1126 = int_to_ptr.vmem [resolvable:$true] %s1125
      %s1127 = sshll.u32 %s16, 4
      %s1128 = int_to_ptr.hbm [resolvable:$true] %s1127
      %1130 = dma.vmem_to_hbm [thread:$0]  %s1126, 32, %s1128, [#allocation17]
    $region97: #{tpu_custom_call.1} parent=1 // pred_fallthru
      _
    // Predicated region
    $region98: #{tpu_custom_call.1} parent=1 // pred_check
      _
    $region99: #{tpu_custom_call.1} parent=1 // pred_check_branch
      %1132 = sbr.rel (0) target = $region101
    $region100: #{tpu_custom_call.1} parent=1 // pred_region
      %1134 = dma.done [#allocation5], 256
    $region101: #{tpu_custom_call.1} parent=1 // pred_fallthru
      _
    // Predicated region
    $region102: #{tpu_custom_call.1} parent=1 // pred_check
      _
    $region103: #{tpu_custom_call.1} parent=1 // pred_check_branch
      %1136 = sbr.rel (0) target = $region105
    $region104: #{tpu_custom_call.1} parent=1 // pred_region
      %1138 = dma.done [#allocation17], 32
    $region105: #{tpu_custom_call.1} parent=1 // pred_fallthru
      _
    %1139 = vsyncpa [#allocation4], 1
    %1140 = vsyncpa [#allocation7], 1
    %1141 = vsyncpa [#allocation10], 1
    %1142 = vsyncpa [#allocation13], 1
    %1143 = vsyncpa [#allocation5], 1
    %1144 = vsyncpa [#allocation17], 1

// kernel: tpu_custom_call.1
$region0: #{tpu_custom_call.1}
  #allocation0 [shape = 'u32[]', space=smem, size = 0x4, offset = 0x4, fixed_abs, tag = 'smem constant byte address 0x4 - core index']
  #allocation1 [shape = 'u32[72,128]{1,0:T(1,128)}', space=vmem, size = 0x9000, scoped, tag = 'internal scratch']
  #allocation2 [shape = 'f32[1,1]{1,0:T(1,128)S(1)}', space=vmem, size = 0x200, scoped, tag = 'scoped memory for tpu_custom_call.1']
  %s0 = inlined_call_operand.hbm [shape: f32[2,8,128], index: 0, kind: input, shape index: {}]
  %s1 = inlined_call_operand.hbm [shape: bf16[128,512], index: 1, kind: input, shape index: {}]
  %s2 = inlined_call_operand.hbm [shape: f32[1,512], index: 2, kind: input, shape index: {}]
  %s3 = inlined_call_operand.vmem [shape: f32[1,256], index: 3, kind: input, shape index: {}]
  %s4 = inlined_call_operand.vmem [shape: f32[1,256], index: 4, kind: input, shape index: {}]
  %s5 = inlined_call_operand.hbm [shape: bf16[256,128], index: 5, kind: input, shape index: {}]
  %s6 = inlined_call_operand.vmem [shape: f32[1,128], index: 6, kind: input, shape index: {}]
  %s7 = inlined_call_operand.hbm [shape: bf16[128,128], index: 7, kind: input, shape index: {}]
  %s8 = inlined_call_operand.vmem [shape: f32[1,128], index: 8, kind: input, shape index: {}]
  %s9 = inlined_call_operand.hbm [shape: bf16[256,128], index: 9, kind: input, shape index: {}]
  %s10 = inlined_call_operand.vmem [shape: f32[1,128], index: 10, kind: input, shape index: {}]
  %s11 = inlined_call_operand.hbm [shape: bf16[128,128], index: 11, kind: input, shape index: {}]
  %s12 = inlined_call_operand.vmem [shape: f32[1,128], index: 12, kind: input, shape index: {}]
  %s13 = inlined_call_operand.vmem [shape: f32[1,128], index: 13, kind: input, shape index: {}]
  %s14 = inlined_call_operand.<no memory space> [shape: f32[1,1], index: 14, kind: input, shape index: {}]
  %s15 = inlined_call_operand.hbm [shape: f32[2,8,128], index: 15, kind: output, shape index: {0}]
  %s16 = inlined_call_operand.hbm [shape: f32[2,8], index: 16, kind: output, shape index: {1}]
  %17 = xla_tuple %s15, %s16
  %s18 = sld [smem:[#allocation0]]
  $region106: #{tpu_custom_call.1} parent=0
    _
  %s20 = ssub.s32 1, %s18
  %s21 = scalar_select 0, %s20, %s18
  %v22 = vstv %s14
  %23 = vst [vmem:[#allocation2] sm:$0x1] %v22
  $region1: #{tpu_custom_call.1} parent=0
    #allocation3 [shape = 'u8[8192]{0}', space=vmem, size = 0x2000, scoped, tag = 'input window, operand 0, single buffered']
    #allocation4 [shape = 's32[1]{0}', space=sflag, size = 0x4, scoped, tag = 'scoped memory for tpu_custom_call.1']
    #allocation5 [shape = 's32[1]{0}', space=sflag, size = 0x4, scoped, tag = 'scoped memory for tpu_custom_call.1']
    #allocation6 [shape = 'u8[131072]{0}', space=vmem, size = 0x20000, scoped, tag = 'input window, operand 1, single buffered']
    #allocation7 [shape = 's32[1]{0}', space=sflag, size = 0x4, scoped, tag = 'scoped memory for tpu_custom_call.1']
    #allocation8 [shape = 'u8[2048]{0}', space=vmem, size = 0x800, scoped, tag = 'input window, operand 2, single buffered']
    #allocation9 [shape = 'u8[65536]{0}', space=vmem, size = 0x10000, scoped, tag = 'input window, operand 5, single buffered']
    #allocation10 [shape = 's32[1]{0}', space=sflag, size = 0x4, scoped, tag = 'scoped memory for tpu_custom_call.1']
    #allocation11 [shape = 'u8[32768]{0}', space=vmem, size = 0x8000, scoped, tag = 'input window, operand 7, single buffered']
    #allocation12 [shape = 'u8[65536]{0}', space=vmem, size = 0x10000, scoped, tag = 'input window, operand 9, single buffered']
    #allocation13 [shape = 's32[1]{0}', space=sflag, size = 0x4, scoped, tag = 'scoped memory for tpu_custom_call.1']
    #allocation14 [shape = 'u8[32768]{0}', space=vmem, size = 0x8000, scoped, tag = 'input window, operand 11, single buffered']
    #allocation15 [shape = 'u8[8192]{0}', space=vmem, size = 0x2000, scoped, tag = 'output window, operand 0, single buffered']
    #allocation16 [shape = 'u8[1024]{0}', space=vmem, size = 0x400, scoped, tag = 'output window, operand 1, single buffered']
    #allocation17 [shape = 's32[1]{0}', space=sflag, size = 0x4, scoped, tag = 'scoped memory for tpu_custom_call.1']
    %24 = vsyncpa [#allocation4], 0
    %25 = vsyncpa [#allocation7], 0
    %26 = vsyncpa [#allocation10], 0
    %27 = vsyncpa [#allocation13], 0
    %28 = vsyncpa [#allocation5], 0
    %29 = vsyncpa [#allocation17], 0
    // Predicated region
    $region2: #{tpu_custom_call.1} parent=1 // pred_check
      _
    $region3: #{tpu_custom_call.1} parent=1 // pred_check_branch
      %31 = sbr.rel (0) target = $region5
    $region4: #{tpu_custom_call.1} parent=1 // pred_region
      %33 = vsyncadd [#allocation4], 0
      %s34 = sshll.u32 %s0, 4
      %s35 = int_to_ptr.hbm [resolvable:$true] %s34
      %s36 = sshll.u32 [#allocation3], 4
      %s37 = int_to_ptr.vmem [resolvable:$true] %s36
      %42 = dma.hbm_to_vmem [thread:$0]  %s35, 256, %s37, [#allocation4], 128, 128, 8
    $region5: #{tpu_custom_call.1} parent=1 // pred_fallthru
      _
    // Predicated region
    $region6: #{tpu_custom_call.1} parent=1 // pred_check
      _
    $region7: #{tpu_custom_call.1} parent=1 // pred_check_branch
      %44 = sbr.rel (0) target = $region9
    $region8: #{tpu_custom_call.1} parent=1 // pred_region
      %46 = vsyncadd [#allocation7], 0
      %s47 = sshll.u32 %s1, 4
      %s48 = int_to_ptr.hbm [resolvable:$true] %s47
      %s49 = sshll.u32 [#allocation6], 4
      %s50 = int_to_ptr.vmem [resolvable:$true] %s49
      %55 = dma.hbm_to_vmem [thread:$0]  %s48, 4096, %s50, [#allocation7], 256, 256, 16
    $region9: #{tpu_custom_call.1} parent=1 // pred_fallthru
      _
    // Predicated region
    $region10: #{tpu_custom_call.1} parent=1 // pred_check
      _
    $region11: #{tpu_custom_call.1} parent=1 // pred_check_branch
      %57 = sbr.rel (0) target = $region13
    $region12: #{tpu_custom_call.1} parent=1 // pred_region
      %59 = vsyncadd [#allocation7], 0
      %s61 = sshll.u32 %s2, 4
      %s62 = int_to_ptr.hbm [resolvable:$true] %s61
      %s63 = sshll.u32 [#allocation8], 4
      %s64 = int_to_ptr.vmem [resolvable:$true] %s63
      %66 = dma.hbm_to_vmem [thread:$0]  %s62, 64, %s64, [#allocation7]
    $region13: #{tpu_custom_call.1} parent=1 // pred_fallthru
      _
    // Predicated region
    $region14: #{tpu_custom_call.1} parent=1 // pred_check
      _
    $region15: #{tpu_custom_call.1} parent=1 // pred_check_branch
      %68 = sbr.rel (0) target = $region17
    $region16: #{tpu_custom_call.1} parent=1 // pred_region
      _
    $region17: #{tpu_custom_call.1} parent=1 // pred_fallthru
      _
    // Predicated region
    $region18: #{tpu_custom_call.1} parent=1 // pred_check
      _
    $region19: #{tpu_custom_call.1} parent=1 // pred_check_branch
      %70 = sbr.rel (0) target = $region21
    $region20: #{tpu_custom_call.1} parent=1 // pred_region
      _
    $region21: #{tpu_custom_call.1} parent=1 // pred_fallthru
      _
    // Predicated region
    $region22: #{tpu_custom_call.1} parent=1 // pred_check
      _
    $region23: #{tpu_custom_call.1} parent=1 // pred_check_branch
      %72 = sbr.rel (0) target = $region25
    $region24: #{tpu_custom_call.1} parent=1 // pred_region
      %74 = vsyncadd [#allocation10], 0
      %s75 = sshll.u32 %s5, 4
      %s76 = int_to_ptr.hbm [resolvable:$true] %s75
      %s77 = sshll.u32 [#allocation9], 4
      %s78 = int_to_ptr.vmem [resolvable:$true] %s77
      %83 = dma.hbm_to_vmem [thread:$0]  %s76, 2048, %s78, [#allocation10], 64, 64, 4
    $region25: #{tpu_custom_call.1} parent=1 // pred_fallthru
      _
    // Predicated region
    $region26: #{tpu_custom_call.1} parent=1 // pred_check
      _
    $region27: #{tpu_custom_call.1} parent=1 // pred_check_branch
      %85 = sbr.rel (0) target = $region29
    $region28: #{tpu_custom_call.1} parent=1 // pred_region
      _
    $region29: #{tpu_custom_call.1} parent=1 // pred_fallthru
      _
    // Predicated region
    $region30: #{tpu_custom_call.1} parent=1 // pred_check
      _
    $region31: #{tpu_custom_call.1} parent=1 // pred_check_branch
      %87 = sbr.rel (0) target = $region33
    $region32: #{tpu_custom_call.1} parent=1 // pred_region
      %89 = vsyncadd [#allocation10], 0
      %s90 = sshll.u32 %s7, 4
      %s91 = int_to_ptr.hbm [resolvable:$true] %s90
      %s92 = sshll.u32 [#allocation11], 4
      %s93 = int_to_ptr.vmem [resolvable:$true] %s92
      %98 = dma.hbm_to_vmem [thread:$0]  %s91, 1024, %s93, [#allocation10], 64, 64, 4
    $region33: #{tpu_custom_call.1} parent=1 // pred_fallthru
      _
    // Predicated region
    $region34: #{tpu_custom_call.1} parent=1 // pred_check
      _
    $region35: #{tpu_custom_call.1} parent=1 // pred_check_branch
      %100 = sbr.rel (0) target = $region37
    $region36: #{tpu_custom_call.1} parent=1 // pred_region
      _
    $region37: #{tpu_custom_call.1} parent=1 // pred_fallthru
      _
    // Predicated region
    $region38: #{tpu_custom_call.1} parent=1 // pred_check
      _
    $region39: #{tpu_custom_call.1} parent=1 // pred_check_branch
      %102 = sbr.rel (0) target = $region41
    $region40: #{tpu_custom_call.1} parent=1 // pred_region
      %104 = vsyncadd [#allocation13], 0
      %s105 = sshll.u32 %s9, 4
      %s106 = int_to_ptr.hbm [resolvable:$true] %s105
      %s107 = sshll.u32 [#allocation12], 4
      %s108 = int_to_ptr.vmem [resolvable:$true] %s107
      %113 = dma.hbm_to_vmem [thread:$0]  %s106, 2048, %s108, [#allocation13], 64, 64, 4
    $region41: #{tpu_custom_call.1} parent=1 // pred_fallthru
      _
    // Predicated region
    $region42: #{tpu_custom_call.1} parent=1 // pred_check
      _
    $region43: #{tpu_custom_call.1} parent=1 // pred_check_branch
      %115 = sbr.rel (0) target = $region45
    $region44: #{tpu_custom_call.1} parent=1 // pred_region
      _
    $region45: #{tpu_custom_call.1} parent=1 // pred_fallthru
      _
    // Predicated region
    $region46: #{tpu_custom_call.1} parent=1 // pred_check
      _
    $region47: #{tpu_custom_call.1} parent=1 // pred_check_branch
      %117 = sbr.rel (0) target = $region49
    $region48: #{tpu_custom_call.1} parent=1 // pred_region
      %119 = vsyncadd [#allocation13], 0
      %s120 = sshll.u32 %s11, 4
      %s121 = int_to_ptr.hbm [resolvable:$true] %s120
      %s122 = sshll.u32 [#allocation14], 4
      %s123 = int_to_ptr.vmem [resolvable:$true] %s122
      %128 = dma.hbm_to_vmem [thread:$0]  %s121, 1024, %s123, [#allocation13], 64, 64, 4
    $region49: #{tpu_custom_call.1} parent=1 // pred_fallthru
      _
    // Predicated region
    $region50: #{tpu_custom_call.1} parent=1 // pred_check
      _
    $region51: #{tpu_custom_call.1} parent=1 // pred_check_branch
      %130 = sbr.rel (0) target = $region53
    $region52: #{tpu_custom_call.1} parent=1 // pred_region
      _
    $region53: #{tpu_custom_call.1} parent=1 // pred_fallthru
      _
    // Predicated region
    $region54: #{tpu_custom_call.1} parent=1 // pred_check
      _
    $region55: #{tpu_custom_call.1} parent=1 // pred_check_branch
      %132 = sbr.rel (0) target = $region57
    $region56: #{tpu_custom_call.1} parent=1 // pred_region
      _
    $region57: #{tpu_custom_call.1} parent=1 // pred_fallthru
      _
    // Predicated region
    $region58: #{tpu_custom_call.1} parent=1 // pred_check
      _
    $region59: #{tpu_custom_call.1} parent=1 // pred_check_branch
      %134 = sbr.rel (0) target = $region61
    $region60: #{tpu_custom_call.1} parent=1 // pred_region
      _
    $region61: #{tpu_custom_call.1} parent=1 // pred_fallthru
      _
    // Predicated region
    $region62: #{tpu_custom_call.1} parent=1 // pred_check
      _
    $region63: #{tpu_custom_call.1} parent=1 // pred_check_branch
      %136 = sbr.rel (0) target = $region65
    $region64: #{tpu_custom_call.1} parent=1 // pred_region
      %138 = dma.done [#allocation4], 256
    $region65: #{tpu_custom_call.1} parent=1 // pred_fallthru
      _
    // Predicated region
    $region66: #{tpu_custom_call.1} parent=1 // pred_check
      _
    $region67: #{tpu_custom_call.1} parent=1 // pred_check_branch
      %140 = sbr.rel (0) target = $region69
    $region68: #{tpu_custom_call.1} parent=1 // pred_region
      %142 = dma.done [#allocation7], 4096
    $region69: #{tpu_custom_call.1} parent=1 // pred_fallthru
      _
    // Predicated region
    $region70: #{tpu_custom_call.1} parent=1 // pred_check
      _
    $region71: #{tpu_custom_call.1} parent=1 // pred_check_branch
      %144 = sbr.rel (0) target = $region73
    $region72: #{tpu_custom_call.1} parent=1 // pred_region
      %146 = dma.done [#allocation7], 64
    $region73: #{tpu_custom_call.1} parent=1 // pred_fallthru
      _
    // Predicated region
    $region74: #{tpu_custom_call.1} parent=1 // pred_check
      _
    $region75: #{tpu_custom_call.1} parent=1 // pred_check_branch
      %148 = sbr.rel (0) target = $region77
    $region76: #{tpu_custom_call.1} parent=1 // pred_region
      %150 = dma.done [#allocation10], 2048
    $region77: #{tpu_custom_call.1} parent=1 // pred_fallthru
      _
    // Predicated region
    $region78: #{tpu_custom_call.1} parent=1 // pred_check
      _
    $region79: #{tpu_custom_call.1} parent=1 // pred_check_branch
      %152 = sbr.rel (0) target = $region81
    $region80: #{tpu_custom_call.1} parent=1 // pred_region
      %154 = dma.done [#allocation10], 1024
    $region81: #{tpu_custom_call.1} parent=1 // pred_fallthru
      _
    // Predicated region
    $region82: #{tpu_custom_call.1} parent=1 // pred_check
      _
    $region83: #{tpu_custom_call.1} parent=1 // pred_check_branch
      %156 = sbr.rel (0) target = $region85
    $region84: #{tpu_custom_call.1} parent=1 // pred_region
      %158 = dma.done [#allocation13], 2048
    $region85: #{tpu_custom_call.1} parent=1 // pred_fallthru
      _
    // Predicated region
    $region86: #{tpu_custom_call.1} parent=1 // pred_check
      _
    $region87: #{tpu_custom_call.1} parent=1 // pred_check_branch
      %160 = sbr.rel (0) target = $region89
    $region88: #{tpu_custom_call.1} parent=1 // pred_region
      %162 = dma.done [#allocation13], 1024
    $region89: #{tpu_custom_call.1} parent=1 // pred_fallthru
      _
    %v163 = vld [vmem:[#allocation3] sm:$0xff]
    %v164 = vld [vmem:[#allocation3 + $0x8] sm:$0xff]
    %v165 = vpack.c.bf16 %v164, %v163
    %v166 = vld [vmem:[#allocation6] sm:$0xff]
    %v167 = vld [vmem:[#allocation6 + $0x8] sm:$0xff]
    %v168 = vld [vmem:[#allocation6 + $0x10] sm:$0xff]
    %v169 = vld [vmem:[#allocation6 + $0x18] sm:$0xff]
    %v170 = vld [vmem:[#allocation6 + $0x20] sm:$0xff]
    %v171 = vld [vmem:[#allocation6 + $0x28] sm:$0xff]
    %v172 = vld [vmem:[#allocation6 + $0x30] sm:$0xff]
    %v173 = vld [vmem:[#allocation6 + $0x38] sm:$0xff]
    %v174 = vld [vmem:[#allocation6 + $0x40] sm:$0xff]
    %v175 = vld [vmem:[#allocation6 + $0x48] sm:$0xff]
    %v176 = vld [vmem:[#allocation6 + $0x50] sm:$0xff]
    %v177 = vld [vmem:[#allocation6 + $0x58] sm:$0xff]
    %v178 = vld [vmem:[#allocation6 + $0x60] sm:$0xff]
    %v179 = vld [vmem:[#allocation6 + $0x68] sm:$0xff]
    %v180 = vld [vmem:[#allocation6 + $0x70] sm:$0xff]
    %v181 = vld [vmem:[#allocation6 + $0x78] sm:$0xff]
    %v182 = vld [vmem:[#allocation6 + $0x80] sm:$0xff]
    %v183 = vld [vmem:[#allocation6 + $0x88] sm:$0xff]
    %v184 = vld [vmem:[#allocation6 + $0x90] sm:$0xff]
    %v185 = vld [vmem:[#allocation6 + $0x98] sm:$0xff]
    %v186 = vld [vmem:[#allocation6 + $0xa0] sm:$0xff]
    %v187 = vld [vmem:[#allocation6 + $0xa8] sm:$0xff]
    %v188 = vld [vmem:[#allocation6 + $0xb0] sm:$0xff]
    %v189 = vld [vmem:[#allocation6 + $0xb8] sm:$0xff]
    %v190 = vld [vmem:[#allocation6 + $0xc0] sm:$0xff]
    %v191 = vld [vmem:[#allocation6 + $0xc8] sm:$0xff]
    %v192 = vld [vmem:[#allocation6 + $0xd0] sm:$0xff]
    %v193 = vld [vmem:[#allocation6 + $0xd8] sm:$0xff]
    %v194 = vld [vmem:[#allocation6 + $0xe0] sm:$0xff]
    %v195 = vld [vmem:[#allocation6 + $0xe8] sm:$0xff]
    %v196 = vld [vmem:[#allocation6 + $0xf0] sm:$0xff]
    %v197 = vld [vmem:[#allocation6 + $0xf8] sm:$0xff]
    %v198 = vld [vmem:[#allocation8] sm:$0xf]
    %v200 = vperm.slane %v198, 0
    %v201 = vperm.slane %v198, 1
    %v202 = vperm.slane %v198, 2
    %v203 = vperm.slane %v198, 3
    %v240 = vunpack.c.l.b16 %v166
    %v241 = vunpack.c.h.b16 %v166
    %v242 = vunpack.c.l.b16 %v167
    %v243 = vunpack.c.h.b16 %v167
    %v244 = vunpack.c.l.b16 %v168
    %v245 = vunpack.c.h.b16 %v168
    %v246 = vunpack.c.l.b16 %v169
    %v247 = vunpack.c.h.b16 %v169
    %v248 = vunpack.c.l.b16 %v170
    %v249 = vunpack.c.h.b16 %v170
    %v250 = vunpack.c.l.b16 %v171
    %v251 = vunpack.c.h.b16 %v171
    %v252 = vunpack.c.l.b16 %v172
    %v253 = vunpack.c.h.b16 %v172
    %v254 = vunpack.c.l.b16 %v173
    %v255 = vunpack.c.h.b16 %v173
    %v256 = vunpack.c.l.b16 %v174
    %v257 = vunpack.c.h.b16 %v174
    %v258 = vunpack.c.l.b16 %v175
    %v259 = vunpack.c.h.b16 %v175
    %v260 = vunpack.c.l.b16 %v176
    %v261 = vunpack.c.h.b16 %v176
    %v262 = vunpack.c.l.b16 %v177
    %v263 = vunpack.c.h.b16 %v177
    %v264 = vunpack.c.l.b16 %v178
    %v265 = vunpack.c.h.b16 %v178
    %v266 = vunpack.c.l.b16 %v179
    %v267 = vunpack.c.h.b16 %v179
    %v268 = vunpack.c.l.b16 %v180
    %v269 = vunpack.c.h.b16 %v180
    %v270 = vunpack.c.l.b16 %v181
    %v271 = vunpack.c.h.b16 %v181
    %v272 = vunpack.c.l.b16 %v182
    %v273 = vunpack.c.h.b16 %v182
    %v274 = vunpack.c.l.b16 %v183
    %v275 = vunpack.c.h.b16 %v183
    %v276 = vunpack.c.l.b16 %v184
    %v277 = vunpack.c.h.b16 %v184
    %v278 = vunpack.c.l.b16 %v185
    %v279 = vunpack.c.h.b16 %v185
    %v280 = vunpack.c.l.b16 %v186
    %v281 = vunpack.c.h.b16 %v186
    %v282 = vunpack.c.l.b16 %v187
    %v283 = vunpack.c.h.b16 %v187
    %v284 = vunpack.c.l.b16 %v188
    %v285 = vunpack.c.h.b16 %v188
    %v286 = vunpack.c.l.b16 %v189
    %v287 = vunpack.c.h.b16 %v189
    %v288 = vunpack.c.l.b16 %v190
    %v289 = vunpack.c.h.b16 %v190
    %v290 = vunpack.c.l.b16 %v191
    %v291 = vunpack.c.h.b16 %v191
    %v292 = vunpack.c.l.b16 %v192
    %v293 = vunpack.c.h.b16 %v192
    %v294 = vunpack.c.l.b16 %v193
    %v295 = vunpack.c.h.b16 %v193
    %v296 = vunpack.c.l.b16 %v194
    %v297 = vunpack.c.h.b16 %v194
    %v298 = vunpack.c.l.b16 %v195
    %v299 = vunpack.c.h.b16 %v195
    %v300 = vunpack.c.l.b16 %v196
    %v301 = vunpack.c.h.b16 %v196
    %v302 = vunpack.c.l.b16 %v197
    %v303 = vunpack.c.h.b16 %v197
    %v304 = vpack.c.b16 %v244, %v240
    %v305 = vpack.c.b16 %v245, %v241
    %v306 = vpack.c.b16 %v246, %v242
    %v307 = vpack.c.b16 %v247, %v243
    %v308 = vpack.c.b16 %v252, %v248
    %v309 = vpack.c.b16 %v253, %v249
    %v310 = vpack.c.b16 %v254, %v250
    %v311 = vpack.c.b16 %v255, %v251
    %v312 = vpack.c.b16 %v260, %v256
    %v313 = vpack.c.b16 %v261, %v257
    %v314 = vpack.c.b16 %v262, %v258
    %v315 = vpack.c.b16 %v263, %v259
    %v316 = vpack.c.b16 %v268, %v264
    %v317 = vpack.c.b16 %v269, %v265
    %v318 = vpack.c.b16 %v270, %v266
    %v319 = vpack.c.b16 %v271, %v267
    %v320 = vpack.c.b16 %v276, %v272
    %v321 = vpack.c.b16 %v277, %v273
    %v322 = vpack.c.b16 %v278, %v274
    %v323 = vpack.c.b16 %v279, %v275
    %v324 = vpack.c.b16 %v284, %v280
    %v325 = vpack.c.b16 %v285, %v281
    %v326 = vpack.c.b16 %v286, %v282
    %v327 = vpack.c.b16 %v287, %v283
    %v328 = vpack.c.b16 %v292, %v288
    %v329 = vpack.c.b16 %v293, %v289
    %v330 = vpack.c.b16 %v294, %v290
    %v331 = vpack.c.b16 %v295, %v291
    %v332 = vpack.c.b16 %v300, %v296
    %v333 = vpack.c.b16 %v301, %v297
    %v334 = vpack.c.b16 %v302, %v298
    %v335 = vpack.c.b16 %v303, %v299
    %368 = vmatpush.bf16.msra.mxu0 %v332
    %369 = vmatpush.bf16.msra.mxu0 %v328
    %370 = vmatpush.bf16.msra.mxu0 %v324
    %371 = vmatpush.bf16.msra.mxu0 %v320
    %372 = vmatpush.bf16.msra.mxu0 %v316
    %373 = vmatpush.bf16.msra.mxu0 %v312
    %374 = vmatpush.bf16.msra.mxu0 %v308
    %375 = vmatpush.bf16.msra.mxu0 %v304
    %376 = vmatmul.bf16.gmra.mxu0 %v165
    %v377 = vpop.f32.mrf.mxu0
    %v378 = vadd.f32 %v200, %v377
    %v379 = vpop.f32.mrf.mxu0
    %v380 = vadd.f32 %v200, %v379
    %381 = vdwg.mxu0
    %382 = vmatpush.bf16.msra.mxu0 %v333
    %383 = vmatpush.bf16.msra.mxu0 %v329
    %384 = vmatpush.bf16.msra.mxu0 %v325
    %385 = vmatpush.bf16.msra.mxu0 %v321
    %386 = vmatpush.bf16.msra.mxu0 %v317
    %387 = vmatpush.bf16.msra.mxu0 %v313
    %388 = vmatpush.bf16.msra.mxu0 %v309
    %389 = vmatpush.bf16.msra.mxu0 %v305
    %390 = vmatmul.bf16.gmra.mxu0 %v165
    %v391 = vpop.f32.mrf.mxu0
    %v392 = vadd.f32 %v201, %v391
    %v393 = vpop.f32.mrf.mxu0
    %v394 = vadd.f32 %v201, %v393
    %395 = vdwg.mxu0
    %396 = vmatpush.bf16.msra.mxu0 %v334
    %397 = vmatpush.bf16.msra.mxu0 %v330
    %398 = vmatpush.bf16.msra.mxu0 %v326
    %399 = vmatpush.bf16.msra.mxu0 %v322
    %400 = vmatpush.bf16.msra.mxu0 %v318
    %401 = vmatpush.bf16.msra.mxu0 %v314
    %402 = vmatpush.bf16.msra.mxu0 %v310
    %403 = vmatpush.bf16.msra.mxu0 %v306
    %404 = vmatmul.bf16.gmra.mxu0 %v165
    %v405 = vpop.f32.mrf.mxu0
    %v406 = vadd.f32 %v202, %v405
    %v407 = vpop.f32.mrf.mxu0
    %v408 = vadd.f32 %v202, %v407
    %409 = vdwg.mxu0
    %410 = vmatpush.bf16.msra.mxu0 %v335
    %411 = vmatpush.bf16.msra.mxu0 %v331
    %412 = vmatpush.bf16.msra.mxu0 %v327
    %413 = vmatpush.bf16.msra.mxu0 %v323
    %414 = vmatpush.bf16.msra.mxu0 %v319
    %415 = vmatpush.bf16.msra.mxu0 %v315
    %416 = vmatpush.bf16.msra.mxu0 %v311
    %417 = vmatpush.bf16.msra.mxu0 %v307
    %418 = vmatmul.bf16.gmra.mxu0 %v165
    %v419 = vpop.f32.mrf.mxu0
    %v420 = vadd.f32 %v203, %v419
    %v421 = vpop.f32.mrf.mxu0
    %v422 = vadd.f32 %v203, %v421
    %423 = vdwg.mxu0
    %v424 = vadd.f32 %v378, %v392
    %425 = vadd.xlane.f32.xlu0 %v424
    %v426 = vpop.xlane.xlu0 %425
    %v427 = vadd.f32 %v380, %v394
    %428 = vadd.xlane.f32.xlu0 %v427
    %v429 = vpop.xlane.xlu0 %428
    %v430 = vrcp.pop 256.0
    %v431 = vmul.f32 256.0, %v430
    %v432 = vsub.f32 1.0, %v431
    %v433 = vmul.f32 %v430, %v432
    %v434 = vadd.f32 %v430, %v433
    %vm435 = vweird.f32 %v430
    %v436 = vsel %vm435, %v430, %v434
    %v437 = vmul.f32 %v426, %v436
    %v438 = vmul.f32 %v429, %v436
    %v439 = vsub.f32 %v378, %v437
    %v440 = vsub.f32 %v392, %v437
    %v441 = vsub.f32 %v380, %v438
    %v442 = vsub.f32 %v394, %v438
    %v443 = vmul.f32 %v439, %v439
    %v444 = vmul.f32 %v440, %v440
    %v445 = vmul.f32 %v441, %v441
    %v446 = vmul.f32 %v442, %v442
    %v447 = vadd.f32 %v443, %v444
    %448 = vadd.xlane.f32.xlu0 %v447
    %v449 = vpop.xlane.xlu0 %448
    %v450 = vadd.f32 %v445, %v446
    %451 = vadd.xlane.f32.xlu0 %v450
    %v452 = vpop.xlane.xlu0 %451
    %v453 = vmul.f32 %v449, %v436
    %v454 = vmul.f32 %v452, %v436
    %v455 = vadd.f32 %v453, 1e-05
    %v456 = vadd.f32 %v454, 1e-05
    %v457 = vrsqrt.pop %v455
    %v458 = vmul.f32 %v457, %v455
    %v459 = vmul.f32 %v458, %v457
    %v460 = vmul.f32 0.5, %v459
    %v461 = vsub.f32 1.5, %v460
    %v462 = vmul.f32 %v457, %v461
    %vm463 = vweird.f32 %v455
    %vm464 = vweird.f32 %v457
    %vm465 = vmor %vm463, %vm464
    %v466 = vsel %vm465, %v457, %v462
    %v467 = vrsqrt.pop %v456
    %v468 = vmul.f32 %v467, %v456
    %v469 = vmul.f32 %v468, %v467
    %v470 = vmul.f32 0.5, %v469
    %v471 = vsub.f32 1.5, %v470
    %v472 = vmul.f32 %v467, %v471
    %vm473 = vweird.f32 %v456
    %vm474 = vweird.f32 %v467
    %vm475 = vmor %vm473, %vm474
    %v476 = vsel %vm475, %v467, %v472
    %v477 = vmul.f32 %v439, %v466
    %v478 = vmul.f32 %v440, %v466
    %v479 = vmul.f32 %v441, %v476
    %v480 = vmul.f32 %v442, %v476
    %v481 = vld [vmem:[%s3] sm:$0x3]
    %v483 = vperm.slane %v481, 0
    %v484 = vperm.slane %v481, 1
    %v487 = vmul.f32 %v477, %v483
    %v488 = vmul.f32 %v478, %v484
    %v489 = vmul.f32 %v479, %v483
    %v490 = vmul.f32 %v480, %v484
    %v491 = vld [vmem:[%s4] sm:$0x3]
    %v493 = vperm.slane %v491, 0
    %v494 = vperm.slane %v491, 1
    %v497 = vadd.f32 %v487, %v493
    %v498 = vadd.f32 %v488, %v494
    %v499 = vadd.f32 %v489, %v493
    %v500 = vadd.f32 %v490, %v494
    %v501 = vmax.f32 %v497, 0.0
    %v502 = vmax.f32 %v498, 0.0
    %v503 = vmax.f32 %v499, 0.0
    %v504 = vmax.f32 %v500, 0.0
    %v505 = vpack.c.bf16 %v503, %v501
    %v506 = vpack.c.bf16 %v504, %v502
    %v507 = vld [vmem:[#allocation9] sm:$0xf]
    %v508 = vld [vmem:[#allocation9 + $0x4] sm:$0xf]
    %v509 = vld [vmem:[#allocation9 + $0x8] sm:$0xf]
    %v510 = vld [vmem:[#allocation9 + $0xc] sm:$0xf]
    %v511 = vld [vmem:[#allocation9 + $0x10] sm:$0xf]
    %v512 = vld [vmem:[#allocation9 + $0x14] sm:$0xf]
    %v513 = vld [vmem:[#allocation9 + $0x18] sm:$0xf]
    %v514 = vld [vmem:[#allocation9 + $0x1c] sm:$0xf]
    %v515 = vld [vmem:[#allocation9 + $0x20] sm:$0xf]
    %v516 = vld [vmem:[#allocation9 + $0x24] sm:$0xf]
    %v517 = vld [vmem:[#allocation9 + $0x28] sm:$0xf]
    %v518 = vld [vmem:[#allocation9 + $0x2c] sm:$0xf]
    %v519 = vld [vmem:[#allocation9 + $0x30] sm:$0xf]
    %v520 = vld [vmem:[#allocation9 + $0x34] sm:$0xf]
    %v521 = vld [vmem:[#allocation9 + $0x38] sm:$0xf]
    %v522 = vld [vmem:[#allocation9 + $0x3c] sm:$0xf]
    %v523 = vld [vmem:[#allocation9 + $0x40] sm:$0xf]
    %v524 = vld [vmem:[#allocation9 + $0x44] sm:$0xf]
    %v525 = vld [vmem:[#allocation9 + $0x48] sm:$0xf]
    %v526 = vld [vmem:[#allocation9 + $0x4c] sm:$0xf]
    %v527 = vld [vmem:[#allocation9 + $0x50] sm:$0xf]
    %v528 = vld [vmem:[#allocation9 + $0x54] sm:$0xf]
    %v529 = vld [vmem:[#allocation9 + $0x58] sm:$0xf]
    %v530 = vld [vmem:[#allocation9 + $0x5c] sm:$0xf]
    %v531 = vld [vmem:[#allocation9 + $0x60] sm:$0xf]
    %v532 = vld [vmem:[#allocation9 + $0x64] sm:$0xf]
    %v533 = vld [vmem:[#allocation9 + $0x68] sm:$0xf]
    %v534 = vld [vmem:[#allocation9 + $0x6c] sm:$0xf]
    %v535 = vld [vmem:[#allocation9 + $0x70] sm:$0xf]
    %v536 = vld [vmem:[#allocation9 + $0x74] sm:$0xf]
    %v537 = vld [vmem:[#allocation9 + $0x78] sm:$0xf]
    %v538 = vld [vmem:[#allocation9 + $0x7c] sm:$0xf]
    %v539 = vld [vmem:[%s6] sm:$0x1]
    %v541 = vperm.slane %v539, 0
    %v575 = vunpack.c.l.b16 %v507
    %v576 = vunpack.c.l.b16 %v508
    %v577 = vunpack.c.l.b16 %v509
    %v578 = vunpack.c.l.b16 %v510
    %v579 = vunpack.c.l.b16 %v511
    %v580 = vunpack.c.l.b16 %v512
    %v581 = vunpack.c.l.b16 %v513
    %v582 = vunpack.c.l.b16 %v514
    %v583 = vunpack.c.l.b16 %v515
    %v584 = vunpack.c.l.b16 %v516
    %v585 = vunpack.c.l.b16 %v517
    %v586 = vunpack.c.l.b16 %v518
    %v587 = vunpack.c.l.b16 %v519
    %v588 = vunpack.c.l.b16 %v520
    %v589 = vunpack.c.l.b16 %v521
    %v590 = vunpack.c.l.b16 %v522
    %v591 = vunpack.c.l.b16 %v523
    %v592 = vunpack.c.l.b16 %v524
    %v593 = vunpack.c.l.b16 %v525
    %v594 = vunpack.c.l.b16 %v526
    %v595 = vunpack.c.l.b16 %v527
    %v596 = vunpack.c.l.b16 %v528
    %v597 = vunpack.c.l.b16 %v529
    %v598 = vunpack.c.l.b16 %v530
    %v599 = vunpack.c.l.b16 %v531
    %v600 = vunpack.c.l.b16 %v532
    %v601 = vunpack.c.l.b16 %v533
    %v602 = vunpack.c.l.b16 %v534
    %v603 = vunpack.c.l.b16 %v535
    %v604 = vunpack.c.l.b16 %v536
    %v605 = vunpack.c.l.b16 %v537
    %v606 = vunpack.c.l.b16 %v538
    %v607 = vpack.c.b16 %v576, %v575
    %v608 = vpack.c.b16 %v578, %v577
    %v609 = vpack.c.b16 %v580, %v579
    %v610 = vpack.c.b16 %v582, %v581
    %v611 = vpack.c.b16 %v584, %v583
    %v612 = vpack.c.b16 %v586, %v585
    %v613 = vpack.c.b16 %v588, %v587
    %v614 = vpack.c.b16 %v590, %v589
    %v615 = vpack.c.b16 %v592, %v591
    %v616 = vpack.c.b16 %v594, %v593
    %v617 = vpack.c.b16 %v596, %v595
    %v618 = vpack.c.b16 %v598, %v597
    %v619 = vpack.c.b16 %v600, %v599
    %v620 = vpack.c.b16 %v602, %v601
    %v621 = vpack.c.b16 %v604, %v603
    %v622 = vpack.c.b16 %v606, %v605
    %639 = vmatpush.bf16.msra.mxu0 %v614
    %640 = vmatpush.bf16.msra.mxu0 %v613
    %641 = vmatpush.bf16.msra.mxu0 %v612
    %642 = vmatpush.bf16.msra.mxu0 %v611
    %643 = vmatpush.bf16.msra.mxu0 %v610
    %644 = vmatpush.bf16.msra.mxu0 %v609
    %645 = vmatpush.bf16.msra.mxu0 %v608
    %646 = vmatpush.bf16.msra.mxu0 %v607
    %647 = vmatmul.bf16.gmra.mxu0 %v505
    %v648 = vpop.f32.mrf.mxu0
    %v649 = vadd.f32 %v541, %v648
    %v650 = vpop.f32.mrf.mxu0
    %v651 = vadd.f32 %v541, %v650
    %652 = vdwg.mxu0
    %653 = vmatpush.bf16.msra.mxu0 %v622
    %654 = vmatpush.bf16.msra.mxu0 %v621
    %655 = vmatpush.bf16.msra.mxu0 %v620
    %656 = vmatpush.bf16.msra.mxu0 %v619
    %657 = vmatpush.bf16.msra.mxu0 %v618
    %658 = vmatpush.bf16.msra.mxu0 %v617
    %659 = vmatpush.bf16.msra.mxu0 %v616
    %660 = vmatpush.bf16.msra.mxu0 %v615
    %661 = vmatmul.bf16.gmra.mxu0 %v506
    %v662 = vpop.f32.mrf.mxu0
    %v663 = vadd.f32 %v649, %v662
    %v664 = vpop.f32.mrf.mxu0
    %v665 = vadd.f32 %v651, %v664
    %666 = vdwg.mxu0
    %v667 = vpack.c.bf16 %v665, %v663
    %v668 = vld [vmem:[#allocation11] sm:$0xf]
    %v669 = vld [vmem:[#allocation11 + $0x4] sm:$0xf]
    %v670 = vld [vmem:[#allocation11 + $0x8] sm:$0xf]
    %v671 = vld [vmem:[#allocation11 + $0xc] sm:$0xf]
    %v672 = vld [vmem:[#allocation11 + $0x10] sm:$0xf]
    %v673 = vld [vmem:[#allocation11 + $0x14] sm:$0xf]
    %v674 = vld [vmem:[#allocation11 + $0x18] sm:$0xf]
    %v675 = vld [vmem:[#allocation11 + $0x1c] sm:$0xf]
    %v676 = vld [vmem:[#allocation11 + $0x20] sm:$0xf]
    %v677 = vld [vmem:[#allocation11 + $0x24] sm:$0xf]
    %v678 = vld [vmem:[#allocation11 + $0x28] sm:$0xf]
    %v679 = vld [vmem:[#allocation11 + $0x2c] sm:$0xf]
    %v680 = vld [vmem:[#allocation11 + $0x30] sm:$0xf]
    %v681 = vld [vmem:[#allocation11 + $0x34] sm:$0xf]
    %v682 = vld [vmem:[#allocation11 + $0x38] sm:$0xf]
    %v683 = vld [vmem:[#allocation11 + $0x3c] sm:$0xf]
    %v684 = vld [vmem:[%s8] sm:$0x1]
    %v686 = vperm.slane %v684, 0
    %v704 = vunpack.c.l.b16 %v668
    %v705 = vunpack.c.l.b16 %v669
    %v706 = vunpack.c.l.b16 %v670
    %v707 = vunpack.c.l.b16 %v671
    %v708 = vunpack.c.l.b16 %v672
    %v709 = vunpack.c.l.b16 %v673
    %v710 = vunpack.c.l.b16 %v674
    %v711 = vunpack.c.l.b16 %v675
    %v712 = vunpack.c.l.b16 %v676
    %v713 = vunpack.c.l.b16 %v677
    %v714 = vunpack.c.l.b16 %v678
    %v715 = vunpack.c.l.b16 %v679
    %v716 = vunpack.c.l.b16 %v680
    %v717 = vunpack.c.l.b16 %v681
    %v718 = vunpack.c.l.b16 %v682
    %v719 = vunpack.c.l.b16 %v683
    %v720 = vpack.c.b16 %v705, %v704
    %v721 = vpack.c.b16 %v707, %v706
    %v722 = vpack.c.b16 %v709, %v708
    %v723 = vpack.c.b16 %v711, %v710
    %v724 = vpack.c.b16 %v713, %v712
    %v725 = vpack.c.b16 %v715, %v714
    %v726 = vpack.c.b16 %v717, %v716
    %v727 = vpack.c.b16 %v719, %v718
    %736 = vmatpush.bf16.msra.mxu0 %v727
    %737 = vmatpush.bf16.msra.mxu0 %v726
    %738 = vmatpush.bf16.msra.mxu0 %v725
    %739 = vmatpush.bf16.msra.mxu0 %v724
    %740 = vmatpush.bf16.msra.mxu0 %v723
    %741 = vmatpush.bf16.msra.mxu0 %v722
    %742 = vmatpush.bf16.msra.mxu0 %v721
    %743 = vmatpush.bf16.msra.mxu0 %v720
    %744 = vmatmul.bf16.gmra.mxu0 %v667
    %v745 = vpop.f32.mrf.mxu0
    %v746 = vadd.f32 %v686, %v745
    %v747 = vpop.f32.mrf.mxu0
    %v748 = vadd.f32 %v686, %v747
    %749 = vdwg.mxu0
    %750 = vst [vmem:[#allocation15] sm:$0xff] %v746
    %751 = vst [vmem:[#allocation15 + $0x8] sm:$0xff] %v748
    %v752 = vmax.f32 %v406, 0.0
    %v753 = vmax.f32 %v420, 0.0
    %v754 = vmax.f32 %v408, 0.0
    %v755 = vmax.f32 %v422, 0.0
    %v756 = vpack.c.bf16 %v754, %v752
    %v757 = vpack.c.bf16 %v755, %v753
    %v758 = vld [vmem:[#allocation12] sm:$0xf]
    %v759 = vld [vmem:[#allocation12 + $0x4] sm:$0xf]
    %v760 = vld [vmem:[#allocation12 + $0x8] sm:$0xf]
    %v761 = vld [vmem:[#allocation12 + $0xc] sm:$0xf]
    %v762 = vld [vmem:[#allocation12 + $0x10] sm:$0xf]
    %v763 = vld [vmem:[#allocation12 + $0x14] sm:$0xf]
    %v764 = vld [vmem:[#allocation12 + $0x18] sm:$0xf]
    %v765 = vld [vmem:[#allocation12 + $0x1c] sm:$0xf]
    %v766 = vld [vmem:[#allocation12 + $0x20] sm:$0xf]
    %v767 = vld [vmem:[#allocation12 + $0x24] sm:$0xf]
    %v768 = vld [vmem:[#allocation12 + $0x28] sm:$0xf]
    %v769 = vld [vmem:[#allocation12 + $0x2c] sm:$0xf]
    %v770 = vld [vmem:[#allocation12 + $0x30] sm:$0xf]
    %v771 = vld [vmem:[#allocation12 + $0x34] sm:$0xf]
    %v772 = vld [vmem:[#allocation12 + $0x38] sm:$0xf]
    %v773 = vld [vmem:[#allocation12 + $0x3c] sm:$0xf]
    %v774 = vld [vmem:[#allocation12 + $0x40] sm:$0xf]
    %v775 = vld [vmem:[#allocation12 + $0x44] sm:$0xf]
    %v776 = vld [vmem:[#allocation12 + $0x48] sm:$0xf]
    %v777 = vld [vmem:[#allocation12 + $0x4c] sm:$0xf]
    %v778 = vld [vmem:[#allocation12 + $0x50] sm:$0xf]
    %v779 = vld [vmem:[#allocation12 + $0x54] sm:$0xf]
    %v780 = vld [vmem:[#allocation12 + $0x58] sm:$0xf]
    %v781 = vld [vmem:[#allocation12 + $0x5c] sm:$0xf]
    %v782 = vld [vmem:[#allocation12 + $0x60] sm:$0xf]
    %v783 = vld [vmem:[#allocation12 + $0x64] sm:$0xf]
    %v784 = vld [vmem:[#allocation12 + $0x68] sm:$0xf]
    %v785 = vld [vmem:[#allocation12 + $0x6c] sm:$0xf]
    %v786 = vld [vmem:[#allocation12 + $0x70] sm:$0xf]
    %v787 = vld [vmem:[#allocation12 + $0x74] sm:$0xf]
    %v788 = vld [vmem:[#allocation12 + $0x78] sm:$0xf]
    %v789 = vld [vmem:[#allocation12 + $0x7c] sm:$0xf]
    %v790 = vld [vmem:[%s10] sm:$0x1]
    %v792 = vperm.slane %v790, 0
    %v826 = vunpack.c.l.b16 %v758
    %v827 = vunpack.c.l.b16 %v759
    %v828 = vunpack.c.l.b16 %v760
    %v829 = vunpack.c.l.b16 %v761
    %v830 = vunpack.c.l.b16 %v762
    %v831 = vunpack.c.l.b16 %v763
    %v832 = vunpack.c.l.b16 %v764
    %v833 = vunpack.c.l.b16 %v765
    %v834 = vunpack.c.l.b16 %v766
    %v835 = vunpack.c.l.b16 %v767
    %v836 = vunpack.c.l.b16 %v768
    %v837 = vunpack.c.l.b16 %v769
    %v838 = vunpack.c.l.b16 %v770
    %v839 = vunpack.c.l.b16 %v771
    %v840 = vunpack.c.l.b16 %v772
    %v841 = vunpack.c.l.b16 %v773
    %v842 = vunpack.c.l.b16 %v774
    %v843 = vunpack.c.l.b16 %v775
    %v844 = vunpack.c.l.b16 %v776
    %v845 = vunpack.c.l.b16 %v777
    %v846 = vunpack.c.l.b16 %v778
    %v847 = vunpack.c.l.b16 %v779
    %v848 = vunpack.c.l.b16 %v780
    %v849 = vunpack.c.l.b16 %v781
    %v850 = vunpack.c.l.b16 %v782
    %v851 = vunpack.c.l.b16 %v783
    %v852 = vunpack.c.l.b16 %v784
    %v853 = vunpack.c.l.b16 %v785
    %v854 = vunpack.c.l.b16 %v786
    %v855 = vunpack.c.l.b16 %v787
    %v856 = vunpack.c.l.b16 %v788
    %v857 = vunpack.c.l.b16 %v789
    %v858 = vpack.c.b16 %v827, %v826
    %v859 = vpack.c.b16 %v829, %v828
    %v860 = vpack.c.b16 %v831, %v830
    %v861 = vpack.c.b16 %v833, %v832
    %v862 = vpack.c.b16 %v835, %v834
    %v863 = vpack.c.b16 %v837, %v836
    %v864 = vpack.c.b16 %v839, %v838
    %v865 = vpack.c.b16 %v841, %v840
    %v866 = vpack.c.b16 %v843, %v842
    %v867 = vpack.c.b16 %v845, %v844
    %v868 = vpack.c.b16 %v847, %v846
    %v869 = vpack.c.b16 %v849, %v848
    %v870 = vpack.c.b16 %v851, %v850
    %v871 = vpack.c.b16 %v853, %v852
    %v872 = vpack.c.b16 %v855, %v854
    %v873 = vpack.c.b16 %v857, %v856
    %890 = vmatpush.bf16.msra.mxu0 %v865
    %891 = vmatpush.bf16.msra.mxu0 %v864
    %892 = vmatpush.bf16.msra.mxu0 %v863
    %893 = vmatpush.bf16.msra.mxu0 %v862
    %894 = vmatpush.bf16.msra.mxu0 %v861
    %895 = vmatpush.bf16.msra.mxu0 %v860
    %896 = vmatpush.bf16.msra.mxu0 %v859
    %897 = vmatpush.bf16.msra.mxu0 %v858
    %898 = vmatmul.bf16.gmra.mxu0 %v756
    %v899 = vpop.f32.mrf.mxu0
    %v900 = vadd.f32 %v792, %v899
    %v901 = vpop.f32.mrf.mxu0
    %v902 = vadd.f32 %v792, %v901
    %903 = vdwg.mxu0
    %904 = vmatpush.bf16.msra.mxu0 %v873
    %905 = vmatpush.bf16.msra.mxu0 %v872
    %906 = vmatpush.bf16.msra.mxu0 %v871
    %907 = vmatpush.bf16.msra.mxu0 %v870
    %908 = vmatpush.bf16.msra.mxu0 %v869
    %909 = vmatpush.bf16.msra.mxu0 %v868
    %910 = vmatpush.bf16.msra.mxu0 %v867
    %911 = vmatpush.bf16.msra.mxu0 %v866
    %912 = vmatmul.bf16.gmra.mxu0 %v757
    %v913 = vpop.f32.mrf.mxu0
    %v914 = vadd.f32 %v900, %v913
    %v915 = vpop.f32.mrf.mxu0
    %v916 = vadd.f32 %v902, %v915
    %917 = vdwg.mxu0
    %v918 = vpack.c.bf16 %v916, %v914
    %v919 = vld [vmem:[#allocation14] sm:$0xf]
    %v920 = vld [vmem:[#allocation14 + $0x4] sm:$0xf]
    %v921 = vld [vmem:[#allocation14 + $0x8] sm:$0xf]
    %v922 = vld [vmem:[#allocation14 + $0xc] sm:$0xf]
    %v923 = vld [vmem:[#allocation14 + $0x10] sm:$0xf]
    %v924 = vld [vmem:[#allocation14 + $0x14] sm:$0xf]
    %v925 = vld [vmem:[#allocation14 + $0x18] sm:$0xf]
    %v926 = vld [vmem:[#allocation14 + $0x1c] sm:$0xf]
    %v927 = vld [vmem:[#allocation14 + $0x20] sm:$0xf]
    %v928 = vld [vmem:[#allocation14 + $0x24] sm:$0xf]
    %v929 = vld [vmem:[#allocation14 + $0x28] sm:$0xf]
    %v930 = vld [vmem:[#allocation14 + $0x2c] sm:$0xf]
    %v931 = vld [vmem:[#allocation14 + $0x30] sm:$0xf]
    %v932 = vld [vmem:[#allocation14 + $0x34] sm:$0xf]
    %v933 = vld [vmem:[#allocation14 + $0x38] sm:$0xf]
    %v934 = vld [vmem:[#allocation14 + $0x3c] sm:$0xf]
    %v935 = vld [vmem:[%s12] sm:$0x1]
    %v937 = vperm.slane %v935, 0
    %v955 = vunpack.c.l.b16 %v919
    %v956 = vunpack.c.l.b16 %v920
    %v957 = vunpack.c.l.b16 %v921
    %v958 = vunpack.c.l.b16 %v922
    %v959 = vunpack.c.l.b16 %v923
    %v960 = vunpack.c.l.b16 %v924
    %v961 = vunpack.c.l.b16 %v925
    %v962 = vunpack.c.l.b16 %v926
    %v963 = vunpack.c.l.b16 %v927
    %v964 = vunpack.c.l.b16 %v928
    %v965 = vunpack.c.l.b16 %v929
    %v966 = vunpack.c.l.b16 %v930
    %v967 = vunpack.c.l.b16 %v931
    %v968 = vunpack.c.l.b16 %v932
    %v969 = vunpack.c.l.b16 %v933
    %v970 = vunpack.c.l.b16 %v934
    %v971 = vpack.c.b16 %v956, %v955
    %v972 = vpack.c.b16 %v958, %v957
    %v973 = vpack.c.b16 %v960, %v959
    %v974 = vpack.c.b16 %v962, %v961
    %v975 = vpack.c.b16 %v964, %v963
    %v976 = vpack.c.b16 %v966, %v965
    %v977 = vpack.c.b16 %v968, %v967
    %v978 = vpack.c.b16 %v970, %v969
    %987 = vmatpush.bf16.msra.mxu0 %v978
    %988 = vmatpush.bf16.msra.mxu0 %v977
    %989 = vmatpush.bf16.msra.mxu0 %v976
    %990 = vmatpush.bf16.msra.mxu0 %v975
    %991 = vmatpush.bf16.msra.mxu0 %v974
    %992 = vmatpush.bf16.msra.mxu0 %v973
    %993 = vmatpush.bf16.msra.mxu0 %v972
    %994 = vmatpush.bf16.msra.mxu0 %v971
    %995 = vmatmul.bf16.gmra.mxu0 %v918
    %v996 = vpop.f32.mrf.mxu0
    %v997 = vadd.f32 %v937, %v996
    %v998 = vpop.f32.mrf.mxu0
    %v999 = vadd.f32 %v937, %v998
    %1000 = vdwg.mxu0
    %v1001 = vld [vmem:[%s13] sm:$0x1]
    %v1003 = vperm.slane %v1001, 0
    %v1005 = vmul.f32 %v997, %v1003
    %v1006 = vmul.f32 %v999, %v1003
    %1007 = vadd.xlane.f32.xlu0 %v1005
    %v1008 = vpop.xlane.xlu0 %1007
    %1009 = vadd.xlane.f32.xlu0 %v1006
    %v1010 = vpop.xlane.xlu0 %1009
    %v1011 = vld [vmem:[#allocation2] sm:$0x1]
    %v1013 = vperm.slane %v1011, 0
    %1014 = vset.pattern.permute.xlu0 0
    %1015 = vperm.xlu0 %1014, %v1013
    %v1016 = vpop.permute.xlu0 %1015
    %v1018 = vadd.f32 %v1008, %v1016
    %v1019 = vadd.f32 %v1010, %v1016
    %v1022 = vlaneseq
    %v1023 = vand.u32 %v1022, 127
    %v1024 = vperm.slane %v1018, %v1023
    %v1025 = vperm.slane %v1019, %v1023
    %vm1026 = vcmask 1041409
    %v1027 = vsel %vm1026, %v1025, %v1024
    %vm1029 = vcmask 58368
    %v1030 = vsel %vm1029, %v1027, -inf
    %1031 = vmax.xlane.f32.xlu0 %v1030
    %v1032 = vpop.xlane.xlu0 %1031
    %v1034 = vperm.slane %v1032, 0
    %v1035 = vperm.slane %v1032, 1
    %v1038 = vsub.f32 %v1018, %v1034
    %v1039 = vsub.f32 %v1019, %v1035
    %v1040 = vmul.f32 %v1038, 1.442695
    %v1041 = vpow.pop %v1040
    %v1042 = vmul.f32 %v1039, 1.442695
    %v1043 = vpow.pop %v1042
    %1046 = vset.pattern.permute.xlu0 0
    %1047 = vperm.xlu0 %1046, %v1041
    %v1048 = vpop.permute.xlu0 %1047
    %1049 = vset.pattern.permute.xlu0 0
    %1050 = vperm.xlu0 %1049, %v1043
    %v1051 = vpop.permute.xlu0 %1050
    %v1052 = vperm.slane %v1048, %v1023
    %v1053 = vperm.slane %v1051, %v1023
    %v1054 = vsel %vm1026, %v1053, %v1052
    %v1056 = vsel %vm1029, %v1054, 0.0
    %1057 = vadd.xlane.f32.xlu0 %v1056
    %v1058 = vpop.xlane.xlu0 %1057
    %v1060 = vperm.slane %v1058, 0
    %v1061 = vperm.slane %v1058, 1
    %v1064 = vrcp.pop %v1060
    %v1065 = vmul.f32 %v1060, %v1064
    %v1066 = vsub.f32 1.0, %v1065
    %v1067 = vmul.f32 %v1064, %v1066
    %v1068 = vadd.f32 %v1064, %v1067
    %vm1069 = vweird.f32 %v1060
    %vm1070 = vweird.f32 %v1064
    %vm1071 = vmor %vm1069, %vm1070
    %v1072 = vsel %vm1071, %v1064, %v1068
    %v1073 = vand.u32 2147483647, %v1060
    %vm1074 = vcmp.eq.f32.partialorder %v1073, 8.507059e+37
    %v1075 = vand.u32 %v1060, 2147483648
    %v1076 = vor.u32 1.1754944e-38, %v1075
    %v1077 = vsel %vm1074, %v1076, %v1072
    %v1078 = vmul.f32 %v1041, %v1077
    %v1079 = vrcp.pop %v1061
    %v1080 = vmul.f32 %v1061, %v1079
    %v1081 = vsub.f32 1.0, %v1080
    %v1082 = vmul.f32 %v1079, %v1081
    %v1083 = vadd.f32 %v1079, %v1082
    %vm1084 = vweird.f32 %v1061
    %vm1085 = vweird.f32 %v1079
    %vm1086 = vmor %vm1084, %vm1085
    %v1087 = vsel %vm1086, %v1079, %v1083
    %v1088 = vand.u32 2147483647, %v1061
    %vm1089 = vcmp.eq.f32.partialorder %v1088, 8.507059e+37
    %v1090 = vand.u32 %v1061, 2147483648
    %v1091 = vor.u32 1.1754944e-38, %v1090
    %v1092 = vsel %vm1089, %v1091, %v1087
    %v1093 = vmul.f32 %v1043, %v1092
    %1096 = vset.pattern.permute.xlu0 0
    %1097 = vperm.xlu0 %1096, %v1078
    %v1098 = vpop.permute.xlu0 %1097
    %1099 = vset.pattern.permute.xlu0 0
    %1100 = vperm.xlu0 %1099, %v1093
    %v1101 = vpop.permute.xlu0 %1100
    %v1102 = vperm.slane %v1098, %v1023
    %v1103 = vperm.slane %v1101, %v1023
    %v1104 = vsel %vm1026, %v1103, %v1102
    %1106 = vst.msk [vmem:[#allocation16] sm:$0x3] %vm1029, %v1104
    // Predicated region
    $region90: #{tpu_custom_call.1} parent=1 // pred_check
      _
    $region91: #{tpu_custom_call.1} parent=1 // pred_check_branch
      %1108 = sbr.rel (0) target = $region93
    $region92: #{tpu_custom_call.1} parent=1 // pred_region
      %1110 = vsyncadd [#allocation5], 0
      %s1111 = sshll.u32 [#allocation15], 4
      %s1112 = int_to_ptr.vmem [resolvable:$true] %s1111
      %s1113 = sshll.u32 %s15, 4
      %s1114 = int_to_ptr.hbm [resolvable:$true] %s1113
      %1119 = dma.vmem_to_hbm [thread:$0]  %s1112, 256, %s1114, [#allocation5], 128, 128, 8
    $region93: #{tpu_custom_call.1} parent=1 // pred_fallthru
      _
    // Predicated region
    $region94: #{tpu_custom_call.1} parent=1 // pred_check
      _
    $region95: #{tpu_custom_call.1} parent=1 // pred_check_branch
      %1121 = sbr.rel (0) target = $region97
    $region96: #{tpu_custom_call.1} parent=1 // pred_region
      %1123 = vsyncadd [#allocation17], 0
      %s1125 = sshll.u32 [#allocation16], 4
      %s1126 = int_to_ptr.vmem [resolvable:$true] %s1125
      %s1127 = sshll.u32 %s16, 4
      %s1128 = int_to_ptr.hbm [resolvable:$true] %s1127
      %1130 = dma.vmem_to_hbm [thread:$0]  %s1126, 32, %s1128, [#allocation17]
    $region97: #{tpu_custom_call.1} parent=1 // pred_fallthru
      _
    // Predicated region
    $region98: #{tpu_custom_call.1} parent=1 // pred_check
      _
    $region99: #{tpu_custom_call.1} parent=1 // pred_check_branch
      %1132 = sbr.rel (0) target = $region101
    $region100: #{tpu_custom_call.1} parent=1 // pred_region
      %1134 = dma.done [#allocation5], 256
    $region101: #{tpu_custom_call.1} parent=1 // pred_fallthru
      _
    // Predicated region
    $region102: #{tpu_custom_call.1} parent=1 // pred_check
      _
    $region103: #{tpu_custom_call.1} parent=1 // pred_check_branch
      %1136 = sbr.rel (0) target = $region105
    $region104: #{tpu_custom_call.1} parent=1 // pred_region
      %1138 = dma.done [#allocation17], 32
    $region105: #{tpu_custom_call.1} parent=1 // pred_fallthru
      _
    %1139 = vsyncpa [#allocation4], 1
    %1140 = vsyncpa [#allocation7], 1
    %1141 = vsyncpa [#allocation10], 1
    %1142 = vsyncpa [#allocation13], 1
    %1143 = vsyncpa [#allocation5], 1
    %1144 = vsyncpa [#allocation17], 1

</llo_original>
